<compile_context>
chip_gen: v6e
topology: v6e:2x2x1
jax: 0.10.0
libtpu: 0.0.40
codegen_flags: <defaults>
</compile_context>

<pallas_src>
import jax
import jax.numpy as jnp
from jax.experimental import pallas as pl
from jax.experimental.pallas import tpu as pltpu


P_LOGICAL = 1000   # DeepONet latent width in the PyTorch module (folded away)


def _round_up(x, m):
    return ((x + m - 1) // m) * m


def _num_tensorcores():
    """Best-effort TensorCore count per chip (v5e/v6e: 1, v7x: 2)."""
    try:
        info = pltpu.get_tpu_info()
        for attr in ("num_cores", "core_count", "tensorcore_count",
                     "num_tensorcores"):
            n = getattr(info, attr, None)
            if isinstance(n, int) and 1 <= n <= 8:
                return n
    except Exception:
        pass
    try:
        n = getattr(jax.devices()[0], "num_cores", None)
        if isinstance(n, int) and 1 <= n <= 8:
            return n
    except Exception:
        pass
    return 1


def deeponet_kernel(
    b_in_ref, t_in_ref,
    wt0_ref, bt0_ref,
    wt1_ref, bt1_ref,
    wt2_ref, bt2_ref,
    wt3_ref, bt3_ref,
    m_ref, c_ref,
    out_ref,
):
    bf16 = jnp.bfloat16

    # ---- trunk net: 4 x (Linear + Tanh) ----
    h = jnp.tanh(jnp.dot(t_in_ref[...].astype(bf16), wt0_ref[...],
                         preferred_element_type=jnp.float32) + bt0_ref[...])
    h = jnp.tanh(jnp.dot(h.astype(bf16), wt1_ref[...],
                         preferred_element_type=jnp.float32) + bt1_ref[...])
    h = jnp.tanh(jnp.dot(h.astype(bf16), wt2_ref[...],
                         preferred_element_type=jnp.float32) + bt2_ref[...])
    h = jnp.tanh(jnp.dot(h.astype(bf16), wt3_ref[...],
                         preferred_element_type=jnp.float32) + bt3_ref[...])

    # ---- collapsed branch/trunk/wlast combine ----
    # g = h @ M + c   ([Bt, bf]);  out = sum(branch_input * g, axis=1, keepdim)
    g = jnp.dot(h.astype(bf16), m_ref[...],
                preferred_element_type=jnp.float32) + c_ref[...]
    out_ref[...] = jnp.sum(b_in_ref[...] * g, axis=1, keepdims=True)


def deeponet_forward(branch_input, trunk_input, params, *, num_tiles=None,
                     max_block_b=2048):
    B, bf = branch_input.shape
    _, tf = trunk_input.shape
    C = params["wt1"].shape[0]

    if num_tiles is None:
        num_tiles = _num_tensorcores()
    num_tiles = max(1, min(int(num_tiles), pl.cdiv(B, 8)))

    # One 8-aligned tile per core; cap tile size for very large batches.
    block_b = min(_round_up(pl.cdiv(B, num_tiles), 8), max_block_b)
    n_steps = pl.cdiv(B, block_b)
    Bp = block_b * n_steps
    if Bp != B:
        branch_input = jnp.pad(branch_input, ((0, Bp - B), (0, 0)))
        trunk_input = jnp.pad(trunk_input, ((0, Bp - B), (0, 0)))

    def batch_spec(cols):
        return pl.BlockSpec((block_b, cols), lambda i: (i, 0))

    def const_spec(arr):
        # Same block every grid step -> weights stay VMEM-resident.
        return pl.BlockSpec(arr.shape, lambda i: (0, 0))

    args = (
        branch_input, trunk_input,
        params["wt0"], params["bt0"],
        params["wt1"], params["bt1"],
        params["wt2"], params["bt2"],
        params["wt3"], params["bt3"],
        params["m"], params["c"],
    )
    in_specs = [batch_spec(bf), batch_spec(tf)] + [const_spec(a) for a in args[2:]]

    flops = 2 * Bp * (tf * C + 3 * C * C + C * bf) + 2 * Bp * bf
    transcendentals = 4 * Bp * C
    bytes_accessed = (
        int(branch_input.size + trunk_input.size) * 4 + Bp * 4
        + sum(int(v.size) * v.dtype.itemsize for v in params.values())
    )

    out = pl.pallas_call(
        deeponet_kernel,
        out_shape=jax.ShapeDtypeStruct((Bp, 1), jnp.float32),
        grid=(n_steps,),
        in_specs=in_specs,
        out_specs=pl.BlockSpec((block_b, 1), lambda i: (i, 0)),
        compiler_params=pltpu.CompilerParams(
            dimension_semantics=("parallel",)),
        cost_estimate=pl.CostEstimate(
            flops=int(flops),
            transcendentals=int(transcendentals),
            bytes_accessed=int(bytes_accessed),
        ),
    )(*args)
    return out[:B]


def init_params(key, branch_features, trunk_features, common_features):
    """Deterministic synthetic init matching the PyTorch module.

    Returns (kernel_params, f32_reference_params).  Kernel params have the
    branch weight, wt4, bt4 and last_layer_weights folded into a [C, bf]
    matrix M and a [1, bf] vector c (computed in f32, stored in bf16/f32).
    """
    ks = jax.random.split(key, 7)

    def lin(k, fan_in, fan_out):
        bound = 1.0 / jnp.sqrt(jnp.float32(fan_in))
        kw, kb = jax.random.split(k)
        w = jax.random.uniform(kw, (fan_in, fan_out), jnp.float32, -bound, bound)
        b = jax.random.uniform(kb, (1, fan_out), jnp.float32, -bound, bound)
        return w, b

    wb, _ = lin(ks[0], branch_features, P_LOGICAL)        # branch Linear, bias=False
    wt0, bt0 = lin(ks[1], trunk_features, common_features)
    wt1, bt1 = lin(ks[2], common_features, common_features)
    wt2, bt2 = lin(ks[3], common_features, common_features)
    wt3, bt3 = lin(ks[4], common_features, common_features)
    wt4, bt4 = lin(ks[5], common_features, P_LOGICAL)
    wlast = jax.random.normal(ks[6], (P_LOGICAL,), jnp.float32)   # torch.randn(1000)

    # Algebraic fold (f32): M = Wt4 @ (Wb*wlast).T, c = bt4 @ (Wb*wlast).T
    wb_folded = wb * wlast[None, :]                       # [bf, 1000]
    M = wt4 @ wb_folded.T                                 # [C, bf]
    c = bt4 @ wb_folded.T                                 # [1, bf]

    bf16 = jnp.bfloat16
    kernel_params = dict(
        wt0=wt0.astype(bf16), bt0=bt0,
        wt1=wt1.astype(bf16), bt1=bt1,
        wt2=wt2.astype(bf16), bt2=bt2,
        wt3=wt3.astype(bf16), bt3=bt3,
        m=M.astype(bf16), c=c,
    )
    f32_params = dict(
        wb=wb, wt0=wt0, bt0=bt0, wt1=wt1, bt1=bt1, wt2=wt2, bt2=bt2,
        wt3=wt3, bt3=bt3, wt4=wt4, bt4=bt4, wlast=wlast,
    )
    return kernel_params, f32_params


def reference_forward_matched(branch_input, trunk_input, p):
    """Plain-JAX reference using the exact same math/dtypes as the kernel."""
    bf16 = jnp.bfloat16

    def dot(a, b):
        return jnp.dot(a.astype(bf16), b, preferred_element_type=jnp.float32)

    h = jnp.tanh(dot(trunk_input, p["wt0"]) + p["bt0"])
    h = jnp.tanh(dot(h, p["wt1"]) + p["bt1"])
    h = jnp.tanh(dot(h, p["wt2"]) + p["bt2"])
    h = jnp.tanh(dot(h, p["wt3"]) + p["bt3"])
    g = dot(h, p["m"]) + p["c"]
    return jnp.sum(branch_input * g, axis=1, keepdims=True)


def reference_forward_f32(branch_input, trunk_input, p):
    """Original PyTorch semantics in full f32 (un-folded)."""
    branch = branch_input @ p["wb"]
    h = jnp.tanh(trunk_input @ p["wt0"] + p["bt0"])
    h = jnp.tanh(h @ p["wt1"] + p["bt1"])
    h = jnp.tanh(h @ p["wt2"] + p["bt2"])
    h = jnp.tanh(h @ p["wt3"] + p["bt3"])
    trunk = h @ p["wt4"] + p["bt4"]
    return jnp.sum(branch * trunk * p["wlast"][None, :], axis=1, keepdims=True)


if __name__ == "__main__":
    B = 203                  # not a multiple of 8: exercises batch padding/slice
    branch_features = 32
    trunk_features = 8
    common_features = 64

    key = jax.random.PRNGKey(0)
    k_b, k_t, k_p = jax.random.split(key, 3)

    branch_input = jax.random.normal(k_b, (B, branch_features), jnp.float32)
    trunk_input = jax.random.normal(k_t, (B, trunk_features), jnp.float32)
    params, params_f32 = init_params(k_p, branch_features, trunk_features,
                                     common_features)

    out = deeponet_forward(branch_input, trunk_input, params)
    out = jax.block_until_ready(out)
    assert out.shape == (B, 1)

    # Exact-math reference (same bf16/f32 mix as the kernel) — tight check.
    ref = reference_forward_matched(branch_input, trunk_input, params)
    assert jnp.allclose(out, ref, atol=5e-2, rtol=5e-2), (
        float(jnp.max(jnp.abs(out - ref))))

    # Original-module f32 semantics — loose check (covers bf16 + fold drift).
    ref32 = reference_forward_f32(branch_input, trunk_input, params_f32)
    assert jnp.allclose(out, ref32, atol=0.5, rtol=0.1), (
        float(jnp.max(jnp.abs(out - ref32))))

    print("KERNEL_OK")
</pallas_src>

<mosaic_0001>
module attributes {stable_mosaic.version = 11 : i64} {
  func.func @deeponet_kernel(%arg0: i32, %arg1: memref<208x32xf32, #tpu.memory_space<vmem>>, %arg2: memref<208x8xf32, #tpu.memory_space<vmem>>, %arg3: memref<8x64xbf16, #tpu.memory_space<vmem>>, %arg4: memref<1x64xf32, #tpu.memory_space<vmem>>, %arg5: memref<64x64xbf16, #tpu.memory_space<vmem>>, %arg6: memref<1x64xf32, #tpu.memory_space<vmem>>, %arg7: memref<64x64xbf16, #tpu.memory_space<vmem>>, %arg8: memref<1x64xf32, #tpu.memory_space<vmem>>, %arg9: memref<64x64xbf16, #tpu.memory_space<vmem>>, %arg10: memref<1x64xf32, #tpu.memory_space<vmem>>, %arg11: memref<64x32xbf16, #tpu.memory_space<vmem>>, %arg12: memref<1x32xf32, #tpu.memory_space<vmem>>, %arg13: memref<208x1xf32, #tpu.memory_space<vmem>>) attributes {dimension_semantics = [#tpu.dimension_semantics<parallel>], iteration_bounds = array<i64: 1>, scalar_prefetch = 0 : i64, scratch_operands = 0 : i64, tpu.core_type = #tpu.core_type<tc>, window_params = [{transform_indices = @transform_0, window_bounds = array<i64: 208, 32>}, {transform_indices = @transform_1, window_bounds = array<i64: 208, 8>}, {pipeline_mode = #tpu.pipeline_mode<synchronous>, transform_indices = @transform_2, window_bounds = array<i64: 8, 64>}, {pipeline_mode = #tpu.pipeline_mode<synchronous>, transform_indices = @transform_3, window_bounds = array<i64: 1, 64>}, {pipeline_mode = #tpu.pipeline_mode<synchronous>, transform_indices = @transform_4, window_bounds = array<i64: 64, 64>}, {pipeline_mode = #tpu.pipeline_mode<synchronous>, transform_indices = @transform_5, window_bounds = array<i64: 1, 64>}, {pipeline_mode = #tpu.pipeline_mode<synchronous>, transform_indices = @transform_6, window_bounds = array<i64: 64, 64>}, {pipeline_mode = #tpu.pipeline_mode<synchronous>, transform_indices = @transform_7, window_bounds = array<i64: 1, 64>}, {pipeline_mode = #tpu.pipeline_mode<synchronous>, transform_indices = @transform_8, window_bounds = array<i64: 64, 64>}, {pipeline_mode = #tpu.pipeline_mode<synchronous>, transform_indices = @transform_9, window_bounds = array<i64: 1, 64>}, {pipeline_mode = #tpu.pipeline_mode<synchronous>, transform_indices = @transform_10, window_bounds = array<i64: 64, 32>}, {pipeline_mode = #tpu.pipeline_mode<synchronous>, transform_indices = @transform_11, window_bounds = array<i64: 1, 32>}, {transform_indices = @transform_12, window_bounds = array<i64: 208, 1>}]} {
    %c0 = arith.constant 0 : index
    %c0_0 = arith.constant 0 : index
    %0 = vector.load %arg2[%c0, %c0_0] : memref<208x8xf32, #tpu.memory_space<vmem>>, vector<208x8xf32>
    %1 = arith.truncf %0 : vector<208x8xf32> to vector<208x8xbf16>
    %c0_1 = arith.constant 0 : index
    %c0_2 = arith.constant 0 : index
    %2 = vector.load %arg3[%c0_1, %c0_2] : memref<8x64xbf16, #tpu.memory_space<vmem>>, vector<8x64xbf16>
    %cst = arith.constant dense<0.000000e+00> : vector<208x64xf32>
    %3 = tpu.matmul %1, %2, %cst {dimension_numbers = #tpu.dot_dimension_numbers<[1], [0], [0], [1], [0, 0, 1, 1], [], []>} : vector<208x8xbf16>, vector<8x64xbf16>, vector<208x64xf32> -> vector<208x64xf32>
    %c0_3 = arith.constant 0 : index
    %c0_4 = arith.constant 0 : index
    %4 = vector.load %arg4[%c0_3, %c0_4] : memref<1x64xf32, #tpu.memory_space<vmem>>, vector<1x64xf32>
    %5 = vector.broadcast %4 : vector<1x64xf32> to vector<208x64xf32>
    %6 = arith.addf %3, %5 : vector<208x64xf32>
    %7 = math.tanh %6 : vector<208x64xf32>
    %8 = arith.truncf %7 : vector<208x64xf32> to vector<208x64xbf16>
    %c0_5 = arith.constant 0 : index
    %c0_6 = arith.constant 0 : index
    %9 = vector.load %arg5[%c0_5, %c0_6] : memref<64x64xbf16, #tpu.memory_space<vmem>>, vector<64x64xbf16>
    %cst_7 = arith.constant dense<0.000000e+00> : vector<208x64xf32>
    %10 = tpu.matmul %8, %9, %cst_7 {dimension_numbers = #tpu.dot_dimension_numbers<[1], [0], [0], [1], [0, 0, 1, 1], [], []>} : vector<208x64xbf16>, vector<64x64xbf16>, vector<208x64xf32> -> vector<208x64xf32>
    %c0_8 = arith.constant 0 : index
    %c0_9 = arith.constant 0 : index
    %11 = vector.load %arg6[%c0_8, %c0_9] : memref<1x64xf32, #tpu.memory_space<vmem>>, vector<1x64xf32>
    %12 = vector.broadcast %11 : vector<1x64xf32> to vector<208x64xf32>
    %13 = arith.addf %10, %12 : vector<208x64xf32>
    %14 = math.tanh %13 : vector<208x64xf32>
    %15 = arith.truncf %14 : vector<208x64xf32> to vector<208x64xbf16>
    %c0_10 = arith.constant 0 : index
    %c0_11 = arith.constant 0 : index
    %16 = vector.load %arg7[%c0_10, %c0_11] : memref<64x64xbf16, #tpu.memory_space<vmem>>, vector<64x64xbf16>
    %cst_12 = arith.constant dense<0.000000e+00> : vector<208x64xf32>
    %17 = tpu.matmul %15, %16, %cst_12 {dimension_numbers = #tpu.dot_dimension_numbers<[1], [0], [0], [1], [0, 0, 1, 1], [], []>} : vector<208x64xbf16>, vector<64x64xbf16>, vector<208x64xf32> -> vector<208x64xf32>
    %c0_13 = arith.constant 0 : index
    %c0_14 = arith.constant 0 : index
    %18 = vector.load %arg8[%c0_13, %c0_14] : memref<1x64xf32, #tpu.memory_space<vmem>>, vector<1x64xf32>
    %19 = vector.broadcast %18 : vector<1x64xf32> to vector<208x64xf32>
    %20 = arith.addf %17, %19 : vector<208x64xf32>
    %21 = math.tanh %20 : vector<208x64xf32>
    %22 = arith.truncf %21 : vector<208x64xf32> to vector<208x64xbf16>
    %c0_15 = arith.constant 0 : index
    %c0_16 = arith.constant 0 : index
    %23 = vector.load %arg9[%c0_15, %c0_16] : memref<64x64xbf16, #tpu.memory_space<vmem>>, vector<64x64xbf16>
    %cst_17 = arith.constant dense<0.000000e+00> : vector<208x64xf32>
    %24 = tpu.matmul %22, %23, %cst_17 {dimension_numbers = #tpu.dot_dimension_numbers<[1], [0], [0], [1], [0, 0, 1, 1], [], []>} : vector<208x64xbf16>, vector<64x64xbf16>, vector<208x64xf32> -> vector<208x64xf32>
    %c0_18 = arith.constant 0 : index
    %c0_19 = arith.constant 0 : index
    %25 = vector.load %arg10[%c0_18, %c0_19] : memref<1x64xf32, #tpu.memory_space<vmem>>, vector<1x64xf32>
    %26 = vector.broadcast %25 : vector<1x64xf32> to vector<208x64xf32>
    %27 = arith.addf %24, %26 : vector<208x64xf32>
    %28 = math.tanh %27 : vector<208x64xf32>
    %29 = arith.truncf %28 : vector<208x64xf32> to vector<208x64xbf16>
    %c0_20 = arith.constant 0 : index
    %c0_21 = arith.constant 0 : index
    %30 = vector.load %arg11[%c0_20, %c0_21] : memref<64x32xbf16, #tpu.memory_space<vmem>>, vector<64x32xbf16>
    %cst_22 = arith.constant dense<0.000000e+00> : vector<208x32xf32>
    %31 = tpu.matmul %29, %30, %cst_22 {dimension_numbers = #tpu.dot_dimension_numbers<[1], [0], [0], [1], [0, 0, 1, 1], [], []>} : vector<208x64xbf16>, vector<64x32xbf16>, vector<208x32xf32> -> vector<208x32xf32>
    %c0_23 = arith.constant 0 : index
    %c0_24 = arith.constant 0 : index
    %32 = vector.load %arg12[%c0_23, %c0_24] : memref<1x32xf32, #tpu.memory_space<vmem>>, vector<1x32xf32>
    %33 = vector.broadcast %32 : vector<1x32xf32> to vector<208x32xf32>
    %34 = arith.addf %31, %33 : vector<208x32xf32>
    %c0_25 = arith.constant 0 : index
    %c0_26 = arith.constant 0 : index
    %35 = vector.load %arg1[%c0_25, %c0_26] : memref<208x32xf32, #tpu.memory_space<vmem>>, vector<208x32xf32>
    %36 = arith.mulf %35, %34 : vector<208x32xf32>
    %cst_27 = arith.constant dense<0.000000e+00> : vector<208xf32>
    %37 = vector.multi_reduction <add>, %36, %cst_27 [1] : vector<208x32xf32> to vector<208xf32>
    %38 = vector.shape_cast %37 : vector<208xf32> to vector<208x1xf32>
    %c0_28 = arith.constant 0 : index
    %c0_29 = arith.constant 0 : index
    %39 = vector.load %arg13[%c0_28, %c0_29] : memref<208x1xf32, #tpu.memory_space<vmem>>, vector<208x1xf32>
    tpu.vector_store %arg13[%c0_28, %c0_29], %38 {strides = array<i32>} : memref<208x1xf32, #tpu.memory_space<vmem>>, vector<208x1xf32>,
    return
  }
  func.func @transform_0(%arg0: i32) -> (i32, i32) {
    %c0_i32 = arith.constant 0 : i32
    %c0_i32_0 = arith.constant 0 : i32
    return %arg0, %c0_i32 : i32, i32
  }
  func.func @transform_1(%arg0: i32) -> (i32, i32) {
    %c0_i32 = arith.constant 0 : i32
    %c0_i32_0 = arith.constant 0 : i32
    return %arg0, %c0_i32 : i32, i32
  }
  func.func @transform_2(%arg0: i32) -> (i32, i32) {
    %c0_i32 = arith.constant 0 : i32
    %c0_i32_0 = arith.constant 0 : i32
    %c0_i32_1 = arith.constant 0 : i32
    return %c0_i32, %c0_i32_0 : i32, i32
  }
  func.func @transform_3(%arg0: i32) -> (i32, i32) {
    %c0_i32 = arith.constant 0 : i32
    %c0_i32_0 = arith.constant 0 : i32
    %c0_i32_1 = arith.constant 0 : i32
    return %c0_i32, %c0_i32_0 : i32, i32
  }
  func.func @transform_4(%arg0: i32) -> (i32, i32) {
    %c0_i32 = arith.constant 0 : i32
    %c0_i32_0 = arith.constant 0 : i32
    %c0_i32_1 = arith.constant 0 : i32
    return %c0_i32, %c0_i32_0 : i32, i32
  }
  func.func @transform_5(%arg0: i32) -> (i32, i32) {
    %c0_i32 = arith.constant 0 : i32
    %c0_i32_0 = arith.constant 0 : i32
    %c0_i32_1 = arith.constant 0 : i32
    return %c0_i32, %c0_i32_0 : i32, i32
  }
  func.func @transform_6(%arg0: i32) -> (i32, i32) {
    %c0_i32 = arith.constant 0 : i32
    %c0_i32_0 = arith.constant 0 : i32
    %c0_i32_1 = arith.constant 0 : i32
    return %c0_i32, %c0_i32_0 : i32, i32
  }
  func.func @transform_7(%arg0: i32) -> (i32, i32) {
    %c0_i32 = arith.constant 0 : i32
    %c0_i32_0 = arith.constant 0 : i32
    %c0_i32_1 = arith.constant 0 : i32
    return %c0_i32, %c0_i32_0 : i32, i32
  }
  func.func @transform_8(%arg0: i32) -> (i32, i32) {
    %c0_i32 = arith.constant 0 : i32
    %c0_i32_0 = arith.constant 0 : i32
    %c0_i32_1 = arith.constant 0 : i32
    return %c0_i32, %c0_i32_0 : i32, i32
  }
  func.func @transform_9(%arg0: i32) -> (i32, i32) {
    %c0_i32 = arith.constant 0 : i32
    %c0_i32_0 = arith.constant 0 : i32
    %c0_i32_1 = arith.constant 0 : i32
    return %c0_i32, %c0_i32_0 : i32, i32
  }
  func.func @transform_10(%arg0: i32) -> (i32, i32) {
    %c0_i32 = arith.constant 0 : i32
    %c0_i32_0 = arith.constant 0 : i32
    %c0_i32_1 = arith.constant 0 : i32
    return %c0_i32, %c0_i32_0 : i32, i32
  }
  func.func @transform_11(%arg0: i32) -> (i32, i32) {
    %c0_i32 = arith.constant 0 : i32
    %c0_i32_0 = arith.constant 0 : i32
    %c0_i32_1 = arith.constant 0 : i32
    return %c0_i32, %c0_i32_0 : i32, i32
  }
  func.func @transform_12(%arg0: i32) -> (i32, i32) {
    %c0_i32 = arith.constant 0 : i32
    %c0_i32_0 = arith.constant 0 : i32
    return %arg0, %c0_i32 : i32, i32
  }
}

</mosaic_0001>

<llo_original>
// kernel: tpu_custom_call.1
$region0: #{tpu_custom_call.1}
  #allocation0 [shape = 'u32[]', space=smem, size = 0x4, offset = 0x4, fixed_abs, tag = 'smem constant byte address 0x4 - core index']
  #allocation1 [shape = 'u32[144,128]{1,0:T(1,128)}', space=vmem, size = 0x12000, scoped, tag = 'internal scratch']
  %s0 = inlined_call_operand.vmem [shape: f32[208,32], index: 0, kind: input, shape index: {}]
  %s1 = inlined_call_operand.vmem [shape: f32[208,8], index: 1, kind: input, shape index: {}]
  %s2 = inlined_call_operand.vmem [shape: bf16[8,64], index: 2, kind: input, shape index: {}]
  %s3 = inlined_call_operand.vmem [shape: f32[1,64], index: 3, kind: input, shape index: {}]
  %s4 = inlined_call_operand.vmem [shape: bf16[64,64], index: 4, kind: input, shape index: {}]
  %s5 = inlined_call_operand.vmem [shape: f32[1,64], index: 5, kind: input, shape index: {}]
  %s6 = inlined_call_operand.vmem [shape: bf16[64,64], index: 6, kind: input, shape index: {}]
  %s7 = inlined_call_operand.vmem [shape: f32[1,64], index: 7, kind: input, shape index: {}]
  %s8 = inlined_call_operand.vmem [shape: bf16[64,64], index: 8, kind: input, shape index: {}]
  %s9 = inlined_call_operand.vmem [shape: f32[1,64], index: 9, kind: input, shape index: {}]
  %s10 = inlined_call_operand.vmem [shape: bf16[64,32], index: 10, kind: input, shape index: {}]
  %s11 = inlined_call_operand.vmem [shape: f32[1,32], index: 11, kind: input, shape index: {}]
  %s12 = inlined_call_operand.vmem [shape: f32[208,1], index: 12, kind: output, shape index: {}]
  %s13 = sld [smem:[#allocation0]]
  $region58: #{tpu_custom_call.1} parent=0
    _
  %s15 = ssub.s32 1, %s13
  %s16 = scalar_select 0, %s15, %s13
  // Predicated region
  $region2: #{tpu_custom_call.1} parent=0 // pred_check
    _
  $region3: #{tpu_custom_call.1} parent=0 // pred_check_branch
    %18 = sbr.rel (0) target = $region5
  $region4: #{tpu_custom_call.1} parent=0 // pred_region
    _
  $region5: #{tpu_custom_call.1} parent=0 // pred_fallthru
    _
  // Predicated region
  $region6: #{tpu_custom_call.1} parent=0 // pred_check
    _
  $region7: #{tpu_custom_call.1} parent=0 // pred_check_branch
    %20 = sbr.rel (0) target = $region9
  $region8: #{tpu_custom_call.1} parent=0 // pred_region
    _
  $region9: #{tpu_custom_call.1} parent=0 // pred_fallthru
    _
  // Predicated region
  $region10: #{tpu_custom_call.1} parent=0 // pred_check
    _
  $region11: #{tpu_custom_call.1} parent=0 // pred_check_branch
    %22 = sbr.rel (0) target = $region13
  $region12: #{tpu_custom_call.1} parent=0 // pred_region
    _
  $region13: #{tpu_custom_call.1} parent=0 // pred_fallthru
    _
  // Predicated region
  $region14: #{tpu_custom_call.1} parent=0 // pred_check
    _
  $region15: #{tpu_custom_call.1} parent=0 // pred_check_branch
    %24 = sbr.rel (0) target = $region17
  $region16: #{tpu_custom_call.1} parent=0 // pred_region
    _
  $region17: #{tpu_custom_call.1} parent=0 // pred_fallthru
    _
  // Predicated region
  $region18: #{tpu_custom_call.1} parent=0 // pred_check
    _
  $region19: #{tpu_custom_call.1} parent=0 // pred_check_branch
    %26 = sbr.rel (0) target = $region21
  $region20: #{tpu_custom_call.1} parent=0 // pred_region
    _
  $region21: #{tpu_custom_call.1} parent=0 // pred_fallthru
    _
  // Predicated region
  $region22: #{tpu_custom_call.1} parent=0 // pred_check
    _
  $region23: #{tpu_custom_call.1} parent=0 // pred_check_branch
    %28 = sbr.rel (0) target = $region25
  $region24: #{tpu_custom_call.1} parent=0 // pred_region
    _
  $region25: #{tpu_custom_call.1} parent=0 // pred_fallthru
    _
  // Predicated region
  $region26: #{tpu_custom_call.1} parent=0 // pred_check
    _
  $region27: #{tpu_custom_call.1} parent=0 // pred_check_branch
    %30 = sbr.rel (0) target = $region29
  $region28: #{tpu_custom_call.1} parent=0 // pred_region
    _
  $region29: #{tpu_custom_call.1} parent=0 // pred_fallthru
    _
  // Predicated region
  $region30: #{tpu_custom_call.1} parent=0 // pred_check
    _
  $region31: #{tpu_custom_call.1} parent=0 // pred_check_branch
    %32 = sbr.rel (0) target = $region33
  $region32: #{tpu_custom_call.1} parent=0 // pred_region
    _
  $region33: #{tpu_custom_call.1} parent=0 // pred_fallthru
    _
  // Predicated region
  $region34: #{tpu_custom_call.1} parent=0 // pred_check
    _
  $region35: #{tpu_custom_call.1} parent=0 // pred_check_branch
    %34 = sbr.rel (0) target = $region37
  $region36: #{tpu_custom_call.1} parent=0 // pred_region
    _
  $region37: #{tpu_custom_call.1} parent=0 // pred_fallthru
    _
  // Predicated region
  $region38: #{tpu_custom_call.1} parent=0 // pred_check
    _
  $region39: #{tpu_custom_call.1} parent=0 // pred_check_branch
    %36 = sbr.rel (0) target = $region41
  $region40: #{tpu_custom_call.1} parent=0 // pred_region
    _
  $region41: #{tpu_custom_call.1} parent=0 // pred_fallthru
    _
  // Predicated region
  $region42: #{tpu_custom_call.1} parent=0 // pred_check
    _
  $region43: #{tpu_custom_call.1} parent=0 // pred_check_branch
    %38 = sbr.rel (0) target = $region45
  $region44: #{tpu_custom_call.1} parent=0 // pred_region
    _
  $region45: #{tpu_custom_call.1} parent=0 // pred_fallthru
    _
  // Predicated region
  $region46: #{tpu_custom_call.1} parent=0 // pred_check
    _
  $region47: #{tpu_custom_call.1} parent=0 // pred_check_branch
    %40 = sbr.rel (0) target = $region49
  $region48: #{tpu_custom_call.1} parent=0 // pred_region
    _
  $region49: #{tpu_custom_call.1} parent=0 // pred_fallthru
    _
  %v42 = vld [vmem:[%s1] sm:$0xff]
  %v43 = vld [vmem:[%s1 + $0x8] sm:$0xff]
  %v44 = vld [vmem:[%s1 + $0x10] sm:$0xff]
  %v45 = vld [vmem:[%s1 + $0x18] sm:$0xff]
  %v46 = vld [vmem:[%s1 + $0x20] sm:$0xff]
  %v47 = vld [vmem:[%s1 + $0x28] sm:$0xff]
  %v48 = vld [vmem:[%s1 + $0x30] sm:$0xff]
  %v49 = vld [vmem:[%s1 + $0x38] sm:$0xff]
  %v50 = vld [vmem:[%s1 + $0x40] sm:$0xff]
  %v51 = vld [vmem:[%s1 + $0x48] sm:$0xff]
  %v52 = vld [vmem:[%s1 + $0x50] sm:$0xff]
  %v53 = vld [vmem:[%s1 + $0x58] sm:$0xff]
  %v54 = vld [vmem:[%s1 + $0x60] sm:$0xff]
  %v55 = vld [vmem:[%s1 + $0x68] sm:$0xff]
  %v56 = vld [vmem:[%s1 + $0x70] sm:$0xff]
  %v57 = vld [vmem:[%s1 + $0x78] sm:$0xff]
  %v58 = vld [vmem:[%s1 + $0x80] sm:$0xff]
  %v59 = vld [vmem:[%s1 + $0x88] sm:$0xff]
  %v60 = vld [vmem:[%s1 + $0x90] sm:$0xff]
  %v61 = vld [vmem:[%s1 + $0x98] sm:$0xff]
  %v62 = vld [vmem:[%s1 + $0xa0] sm:$0xff]
  %v63 = vld [vmem:[%s1 + $0xa8] sm:$0xff]
  %v64 = vld [vmem:[%s1 + $0xb0] sm:$0xff]
  %v65 = vld [vmem:[%s1 + $0xb8] sm:$0xff]
  %v66 = vld [vmem:[%s1 + $0xc0] sm:$0xff]
  %v67 = vld [vmem:[%s1 + $0xc8] sm:$0xff]
  %v68 = vpack.c.bf16 %v43, %v42
  %v69 = vpack.c.bf16 %v45, %v44
  %v70 = vpack.c.bf16 %v47, %v46
  %v71 = vpack.c.bf16 %v49, %v48
  %v72 = vpack.c.bf16 %v51, %v50
  %v73 = vpack.c.bf16 %v53, %v52
  %v74 = vpack.c.bf16 %v55, %v54
  %v75 = vpack.c.bf16 %v57, %v56
  %v76 = vpack.c.bf16 %v59, %v58
  %v77 = vpack.c.bf16 %v61, %v60
  %v78 = vpack.c.bf16 %v63, %v62
  %v79 = vpack.c.bf16 %v65, %v64
  %v80 = vpack.c.bf16 %v67, %v66
  %v81 = vld [vmem:[%s2] sm:$0xf]
  %v82 = vld [vmem:[%s3] sm:$0x1]
  %v84 = vlaneseq
  %v85 = vshrl.u32 %v84, 7
  %v86 = vsub.s32 0, %v85
  %v87 = vrot.slane %v82, %v86
  %vm89 = vcmask 64512
  %v91 = vsel %vm89, %v68, 0
  %v94 = vsel %vm89, %v69, 0
  %v97 = vsel %vm89, %v70, 0
  %v100 = vsel %vm89, %v71, 0
  %v103 = vsel %vm89, %v72, 0
  %v106 = vsel %vm89, %v73, 0
  %v109 = vsel %vm89, %v74, 0
  %v112 = vsel %vm89, %v75, 0
  %v115 = vsel %vm89, %v76, 0
  %v118 = vsel %vm89, %v77, 0
  %v121 = vsel %vm89, %v78, 0
  %v124 = vsel %vm89, %v79, 0
  %v127 = vsel %vm89, %v80, 0
  %vm129 = vcmask 1043456
  %v131 = vsel %vm129, %v81, 0
  %133 = vmatprep.subr.bf16.mxu0 0
  %134 = vmatpush1.bf16.msra.mxu0 0
  %135 = vmatprep.subr.bf16.mxu0 0
  %136 = vmatpush1.bf16.msra.mxu0 0
  %137 = vmatprep.subr.bf16.mxu0 0
  %138 = vmatpush1.bf16.msra.mxu0 0
  %139 = vmatprep.subr.bf16.mxu0 0
  %140 = vmatpush1.bf16.msra.mxu0 0
  %141 = vmatprep.subr.bf16.mxu0 0
  %142 = vmatpush1.bf16.msra.mxu0 0
  %143 = vmatprep.subr.bf16.mxu0 0
  %144 = vmatpush1.bf16.msra.mxu0 0
  %145 = vmatprep.subr.bf16.mxu0 0
  %146 = vmatpush1.bf16.msra.mxu0 0
  %147 = vmatprep.subr.bf16.mxu0 0
  %148 = vmatpush1.bf16.msra.mxu0 %v131
  %149 = vmatprep.subr.bf16.mxu0 0
  %150 = vmatpush2.bf16.msra.mxu0 0
  %151 = vmatprep.subr.bf16.mxu0 0
  %152 = vmatpush2.bf16.msra.mxu0 0
  %153 = vmatprep.subr.bf16.mxu0 0
  %154 = vmatpush2.bf16.msra.mxu0 0
  %155 = vmatprep.subr.bf16.mxu0 0
  %156 = vmatpush2.bf16.msra.mxu0 0
  %157 = vmatprep.subr.bf16.mxu0 0
  %158 = vmatpush2.bf16.msra.mxu0 0
  %159 = vmatprep.subr.bf16.mxu0 0
  %160 = vmatpush2.bf16.msra.mxu0 0
  %161 = vmatprep.subr.bf16.mxu0 0
  %162 = vmatpush2.bf16.msra.mxu0 0
  %163 = vmatprep.subr.bf16.mxu0 0
  %164 = vmatpush2.bf16.msra.mxu0 0
  %165 = vmatprep.mubr.bf16.mxu0 0
  %166 = vmatmul.mubr.bf16.gmra.mxu0 %v91
  %v167 = vpop.f32.mrf.mxu0
  %v168 = vadd.f32 %v87, %v167
  %v169 = vpop.f32.mrf.mxu0
  %v170 = vpop.f32.mrf.mxu0
  %v171 = vadd.f32 %v87, %v170
  %v172 = vpop.f32.mrf.mxu0
  %173 = vmatprep.mubr.bf16.mxu0 0
  %174 = vmatmul.mubr.bf16.gmra.mxu0 %v94
  %v175 = vpop.f32.mrf.mxu0
  %v176 = vadd.f32 %v87, %v175
  %v177 = vpop.f32.mrf.mxu0
  %v178 = vpop.f32.mrf.mxu0
  %v179 = vadd.f32 %v87, %v178
  %v180 = vpop.f32.mrf.mxu0
  %181 = vmatprep.mubr.bf16.mxu0 0
  %182 = vmatmul.mubr.bf16.gmra.mxu0 %v97
  %v183 = vpop.f32.mrf.mxu0
  %v184 = vadd.f32 %v87, %v183
  %v185 = vpop.f32.mrf.mxu0
  %v186 = vpop.f32.mrf.mxu0
  %v187 = vadd.f32 %v87, %v186
  %v188 = vpop.f32.mrf.mxu0
  %189 = vmatprep.mubr.bf16.mxu0 0
  %190 = vmatmul.mubr.bf16.gmra.mxu0 %v100
  %v191 = vpop.f32.mrf.mxu0
  %v192 = vadd.f32 %v87, %v191
  %v193 = vpop.f32.mrf.mxu0
  %v194 = vpop.f32.mrf.mxu0
  %v195 = vadd.f32 %v87, %v194
  %v196 = vpop.f32.mrf.mxu0
  %197 = vmatprep.mubr.bf16.mxu0 0
  %198 = vmatmul.mubr.bf16.gmra.mxu0 %v103
  %v199 = vpop.f32.mrf.mxu0
  %v200 = vadd.f32 %v87, %v199
  %v201 = vpop.f32.mrf.mxu0
  %v202 = vpop.f32.mrf.mxu0
  %v203 = vadd.f32 %v87, %v202
  %v204 = vpop.f32.mrf.mxu0
  %205 = vmatprep.mubr.bf16.mxu0 0
  %206 = vmatmul.mubr.bf16.gmra.mxu0 %v106
  %v207 = vpop.f32.mrf.mxu0
  %v208 = vadd.f32 %v87, %v207
  %v209 = vpop.f32.mrf.mxu0
  %v210 = vpop.f32.mrf.mxu0
  %v211 = vadd.f32 %v87, %v210
  %v212 = vpop.f32.mrf.mxu0
  %213 = vmatprep.mubr.bf16.mxu0 0
  %214 = vmatmul.mubr.bf16.gmra.mxu0 %v109
  %v215 = vpop.f32.mrf.mxu0
  %v216 = vadd.f32 %v87, %v215
  %v217 = vpop.f32.mrf.mxu0
  %v218 = vpop.f32.mrf.mxu0
  %v219 = vadd.f32 %v87, %v218
  %v220 = vpop.f32.mrf.mxu0
  %221 = vmatprep.mubr.bf16.mxu0 0
  %222 = vmatmul.mubr.bf16.gmra.mxu0 %v112
  %v223 = vpop.f32.mrf.mxu0
  %v224 = vadd.f32 %v87, %v223
  %v225 = vpop.f32.mrf.mxu0
  %v226 = vpop.f32.mrf.mxu0
  %v227 = vadd.f32 %v87, %v226
  %v228 = vpop.f32.mrf.mxu0
  %229 = vmatprep.mubr.bf16.mxu0 0
  %230 = vmatmul.mubr.bf16.gmra.mxu0 %v115
  %v231 = vpop.f32.mrf.mxu0
  %v232 = vadd.f32 %v87, %v231
  %v233 = vpop.f32.mrf.mxu0
  %v234 = vpop.f32.mrf.mxu0
  %v235 = vadd.f32 %v87, %v234
  %v236 = vpop.f32.mrf.mxu0
  %237 = vmatprep.mubr.bf16.mxu0 0
  %238 = vmatmul.mubr.bf16.gmra.mxu0 %v118
  %v239 = vpop.f32.mrf.mxu0
  %v240 = vadd.f32 %v87, %v239
  %v241 = vpop.f32.mrf.mxu0
  %v242 = vpop.f32.mrf.mxu0
  %v243 = vadd.f32 %v87, %v242
  %v244 = vpop.f32.mrf.mxu0
  %245 = vmatprep.mubr.bf16.mxu0 0
  %246 = vmatmul.mubr.bf16.gmra.mxu0 %v121
  %v247 = vpop.f32.mrf.mxu0
  %v248 = vadd.f32 %v87, %v247
  %v249 = vpop.f32.mrf.mxu0
  %v250 = vpop.f32.mrf.mxu0
  %v251 = vadd.f32 %v87, %v250
  %v252 = vpop.f32.mrf.mxu0
  %253 = vmatprep.mubr.bf16.mxu0 0
  %254 = vmatmul.mubr.bf16.gmra.mxu0 %v124
  %v255 = vpop.f32.mrf.mxu0
  %v256 = vadd.f32 %v87, %v255
  %v257 = vpop.f32.mrf.mxu0
  %v258 = vpop.f32.mrf.mxu0
  %v259 = vadd.f32 %v87, %v258
  %v260 = vpop.f32.mrf.mxu0
  %261 = vmatprep.mubr.bf16.mxu0 0
  %262 = vmatmul.mubr.bf16.gmra.mxu0 %v127
  %v263 = vpop.f32.mrf.mxu0
  %v264 = vadd.f32 %v87, %v263
  %v265 = vpop.f32.mrf.mxu0
  %v266 = vpop.f32.mrf.mxu0
  %v267 = vadd.f32 %v87, %v266
  %v268 = vpop.f32.mrf.mxu0
  %269 = vdwg.mxu0
  %v270 = vtanh.pop %v168
  %v271 = vtanh.pop %v171
  %v272 = vtanh.pop %v176
  %v273 = vtanh.pop %v179
  %v274 = vtanh.pop %v184
  %v275 = vtanh.pop %v187
  %v276 = vtanh.pop %v192
  %v277 = vtanh.pop %v195
  %v278 = vtanh.pop %v200
  %v279 = vtanh.pop %v203
  %v280 = vtanh.pop %v208
  %v281 = vtanh.pop %v211
  %v282 = vtanh.pop %v216
  %v283 = vtanh.pop %v219
  %v284 = vtanh.pop %v224
  %v285 = vtanh.pop %v227
  %v286 = vtanh.pop %v232
  %v287 = vtanh.pop %v235
  %v288 = vtanh.pop %v240
  %v289 = vtanh.pop %v243
  %v290 = vtanh.pop %v248
  %v291 = vtanh.pop %v251
  %v292 = vtanh.pop %v256
  %v293 = vtanh.pop %v259
  %v294 = vtanh.pop %v264
  %v295 = vtanh.pop %v267
  %v296 = vpack.c.bf16 %v271, %v270
  %v297 = vpack.c.bf16 %v273, %v272
  %v298 = vpack.c.bf16 %v275, %v274
  %v299 = vpack.c.bf16 %v277, %v276
  %v300 = vpack.c.bf16 %v279, %v278
  %v301 = vpack.c.bf16 %v281, %v280
  %v302 = vpack.c.bf16 %v283, %v282
  %v303 = vpack.c.bf16 %v285, %v284
  %v304 = vpack.c.bf16 %v287, %v286
  %v305 = vpack.c.bf16 %v289, %v288
  %v306 = vpack.c.bf16 %v291, %v290
  %v307 = vpack.c.bf16 %v293, %v292
  %v308 = vpack.c.bf16 %v295, %v294
  %v309 = vld [vmem:[%s4] sm:$0xf]
  %v310 = vld [vmem:[%s4 + $0x4] sm:$0xf]
  %v311 = vld [vmem:[%s4 + $0x8] sm:$0xf]
  %v312 = vld [vmem:[%s4 + $0xc] sm:$0xf]
  %v313 = vld [vmem:[%s4 + $0x10] sm:$0xf]
  %v314 = vld [vmem:[%s4 + $0x14] sm:$0xf]
  %v315 = vld [vmem:[%s4 + $0x18] sm:$0xf]
  %v316 = vld [vmem:[%s4 + $0x1c] sm:$0xf]
  %v317 = vld [vmem:[%s5] sm:$0x1]
  %v319 = vlaneseq
  %v320 = vshrl.u32 %v319, 7
  %v321 = vsub.s32 0, %v320
  %v322 = vrot.slane %v317, %v321
  %v332 = vunpack.c.l.b16 %v309
  %v333 = vunpack.c.l.b16 %v310
  %v334 = vunpack.c.l.b16 %v311
  %v335 = vunpack.c.l.b16 %v312
  %v336 = vunpack.c.l.b16 %v313
  %v337 = vunpack.c.l.b16 %v314
  %v338 = vunpack.c.l.b16 %v315
  %v339 = vunpack.c.l.b16 %v316
  %v340 = vpack.c.b16 %v333, %v332
  %v341 = vpack.c.b16 %v335, %v334
  %v342 = vpack.c.b16 %v337, %v336
  %v343 = vpack.c.b16 %v339, %v338
  %vm348 = vcmask 523264
  %v350 = vsel %vm348, %v296, 0
  %v353 = vsel %vm348, %v297, 0
  %v356 = vsel %vm348, %v298, 0
  %v359 = vsel %vm348, %v299, 0
  %v362 = vsel %vm348, %v300, 0
  %v365 = vsel %vm348, %v301, 0
  %v368 = vsel %vm348, %v302, 0
  %v371 = vsel %vm348, %v303, 0
  %v374 = vsel %vm348, %v304, 0
  %v377 = vsel %vm348, %v305, 0
  %v380 = vsel %vm348, %v306, 0
  %v383 = vsel %vm348, %v307, 0
  %v386 = vsel %vm348, %v308, 0
  %388 = vmatprep.subr.bf16.mxu0 0
  %389 = vmatpush1.bf16.msra.mxu0 0
  %390 = vmatprep.subr.bf16.mxu0 0
  %391 = vmatpush1.bf16.msra.mxu0 0
  %392 = vmatprep.subr.bf16.mxu0 0
  %393 = vmatpush1.bf16.msra.mxu0 0
  %394 = vmatprep.subr.bf16.mxu0 0
  %395 = vmatpush1.bf16.msra.mxu0 0
  %396 = vmatprep.subr.bf16.mxu0 0
  %397 = vmatpush1.bf16.msra.mxu0 %v343
  %398 = vmatprep.subr.bf16.mxu0 0
  %399 = vmatpush1.bf16.msra.mxu0 %v342
  %400 = vmatprep.subr.bf16.mxu0 0
  %401 = vmatpush1.bf16.msra.mxu0 %v341
  %402 = vmatprep.subr.bf16.mxu0 0
  %403 = vmatpush1.bf16.msra.mxu0 %v340
  %404 = vmatprep.subr.bf16.mxu0 0
  %405 = vmatpush2.bf16.msra.mxu0 0
  %406 = vmatprep.subr.bf16.mxu0 0
  %407 = vmatpush2.bf16.msra.mxu0 0
  %408 = vmatprep.subr.bf16.mxu0 0
  %409 = vmatpush2.bf16.msra.mxu0 0
  %410 = vmatprep.subr.bf16.mxu0 0
  %411 = vmatpush2.bf16.msra.mxu0 0
  %412 = vmatprep.subr.bf16.mxu0 0
  %413 = vmatpush2.bf16.msra.mxu0 0
  %414 = vmatprep.subr.bf16.mxu0 0
  %415 = vmatpush2.bf16.msra.mxu0 0
  %416 = vmatprep.subr.bf16.mxu0 0
  %417 = vmatpush2.bf16.msra.mxu0 0
  %418 = vmatprep.subr.bf16.mxu0 0
  %419 = vmatpush2.bf16.msra.mxu0 0
  %420 = vmatprep.mubr.bf16.mxu0 0
  %421 = vmatmul.mubr.bf16.gmra.mxu0 %v350
  %v422 = vpop.f32.mrf.mxu0
  %v423 = vadd.f32 %v322, %v422
  %v424 = vpop.f32.mrf.mxu0
  %v425 = vpop.f32.mrf.mxu0
  %v426 = vadd.f32 %v322, %v425
  %v427 = vpop.f32.mrf.mxu0
  %428 = vmatprep.mubr.bf16.mxu0 0
  %429 = vmatmul.mubr.bf16.gmra.mxu0 %v353
  %v430 = vpop.f32.mrf.mxu0
  %v431 = vadd.f32 %v322, %v430
  %v432 = vpop.f32.mrf.mxu0
  %v433 = vpop.f32.mrf.mxu0
  %v434 = vadd.f32 %v322, %v433
  %v435 = vpop.f32.mrf.mxu0
  %436 = vmatprep.mubr.bf16.mxu0 0
  %437 = vmatmul.mubr.bf16.gmra.mxu0 %v356
  %v438 = vpop.f32.mrf.mxu0
  %v439 = vadd.f32 %v322, %v438
  %v440 = vpop.f32.mrf.mxu0
  %v441 = vpop.f32.mrf.mxu0
  %v442 = vadd.f32 %v322, %v441
  %v443 = vpop.f32.mrf.mxu0
  %444 = vmatprep.mubr.bf16.mxu0 0
  %445 = vmatmul.mubr.bf16.gmra.mxu0 %v359
  %v446 = vpop.f32.mrf.mxu0
  %v447 = vadd.f32 %v322, %v446
  %v448 = vpop.f32.mrf.mxu0
  %v449 = vpop.f32.mrf.mxu0
  %v450 = vadd.f32 %v322, %v449
  %v451 = vpop.f32.mrf.mxu0
  %452 = vmatprep.mubr.bf16.mxu0 0
  %453 = vmatmul.mubr.bf16.gmra.mxu0 %v362
  %v454 = vpop.f32.mrf.mxu0
  %v455 = vadd.f32 %v322, %v454
  %v456 = vpop.f32.mrf.mxu0
  %v457 = vpop.f32.mrf.mxu0
  %v458 = vadd.f32 %v322, %v457
  %v459 = vpop.f32.mrf.mxu0
  %460 = vmatprep.mubr.bf16.mxu0 0
  %461 = vmatmul.mubr.bf16.gmra.mxu0 %v365
  %v462 = vpop.f32.mrf.mxu0
  %v463 = vadd.f32 %v322, %v462
  %v464 = vpop.f32.mrf.mxu0
  %v465 = vpop.f32.mrf.mxu0
  %v466 = vadd.f32 %v322, %v465
  %v467 = vpop.f32.mrf.mxu0
  %468 = vmatprep.mubr.bf16.mxu0 0
  %469 = vmatmul.mubr.bf16.gmra.mxu0 %v368
  %v470 = vpop.f32.mrf.mxu0
  %v471 = vadd.f32 %v322, %v470
  %v472 = vpop.f32.mrf.mxu0
  %v473 = vpop.f32.mrf.mxu0
  %v474 = vadd.f32 %v322, %v473
  %v475 = vpop.f32.mrf.mxu0
  %476 = vmatprep.mubr.bf16.mxu0 0
  %477 = vmatmul.mubr.bf16.gmra.mxu0 %v371
  %v478 = vpop.f32.mrf.mxu0
  %v479 = vadd.f32 %v322, %v478
  %v480 = vpop.f32.mrf.mxu0
  %v481 = vpop.f32.mrf.mxu0
  %v482 = vadd.f32 %v322, %v481
  %v483 = vpop.f32.mrf.mxu0
  %484 = vmatprep.mubr.bf16.mxu0 0
  %485 = vmatmul.mubr.bf16.gmra.mxu0 %v374
  %v486 = vpop.f32.mrf.mxu0
  %v487 = vadd.f32 %v322, %v486
  %v488 = vpop.f32.mrf.mxu0
  %v489 = vpop.f32.mrf.mxu0
  %v490 = vadd.f32 %v322, %v489
  %v491 = vpop.f32.mrf.mxu0
  %492 = vmatprep.mubr.bf16.mxu0 0
  %493 = vmatmul.mubr.bf16.gmra.mxu0 %v377
  %v494 = vpop.f32.mrf.mxu0
  %v495 = vadd.f32 %v322, %v494
  %v496 = vpop.f32.mrf.mxu0
  %v497 = vpop.f32.mrf.mxu0
  %v498 = vadd.f32 %v322, %v497
  %v499 = vpop.f32.mrf.mxu0
  %500 = vmatprep.mubr.bf16.mxu0 0
  %501 = vmatmul.mubr.bf16.gmra.mxu0 %v380
  %v502 = vpop.f32.mrf.mxu0
  %v503 = vadd.f32 %v322, %v502
  %v504 = vpop.f32.mrf.mxu0
  %v505 = vpop.f32.mrf.mxu0
  %v506 = vadd.f32 %v322, %v505
  %v507 = vpop.f32.mrf.mxu0
  %508 = vmatprep.mubr.bf16.mxu0 0
  %509 = vmatmul.mubr.bf16.gmra.mxu0 %v383
  %v510 = vpop.f32.mrf.mxu0
  %v511 = vadd.f32 %v322, %v510
  %v512 = vpop.f32.mrf.mxu0
  %v513 = vpop.f32.mrf.mxu0
  %v514 = vadd.f32 %v322, %v513
  %v515 = vpop.f32.mrf.mxu0
  %516 = vmatprep.mubr.bf16.mxu0 0
  %517 = vmatmul.mubr.bf16.gmra.mxu0 %v386
  %v518 = vpop.f32.mrf.mxu0
  %v519 = vadd.f32 %v322, %v518
  %v520 = vpop.f32.mrf.mxu0
  %v521 = vpop.f32.mrf.mxu0
  %v522 = vadd.f32 %v322, %v521
  %v523 = vpop.f32.mrf.mxu0
  %524 = vdwg.mxu0
  %v525 = vtanh.pop %v423
  %v526 = vtanh.pop %v426
  %v527 = vtanh.pop %v431
  %v528 = vtanh.pop %v434
  %v529 = vtanh.pop %v439
  %v530 = vtanh.pop %v442
  %v531 = vtanh.pop %v447
  %v532 = vtanh.pop %v450
  %v533 = vtanh.pop %v455
  %v534 = vtanh.pop %v458
  %v535 = vtanh.pop %v463
  %v536 = vtanh.pop %v466
  %v537 = vtanh.pop %v471
  %v538 = vtanh.pop %v474
  %v539 = vtanh.pop %v479
  %v540 = vtanh.pop %v482
  %v541 = vtanh.pop %v487
  %v542 = vtanh.pop %v490
  %v543 = vtanh.pop %v495
  %v544 = vtanh.pop %v498
  %v545 = vtanh.pop %v503
  %v546 = vtanh.pop %v506
  %v547 = vtanh.pop %v511
  %v548 = vtanh.pop %v514
  %v549 = vtanh.pop %v519
  %v550 = vtanh.pop %v522
  %v551 = vpack.c.bf16 %v526, %v525
  %v552 = vpack.c.bf16 %v528, %v527
  %v553 = vpack.c.bf16 %v530, %v529
  %v554 = vpack.c.bf16 %v532, %v531
  %v555 = vpack.c.bf16 %v534, %v533
  %v556 = vpack.c.bf16 %v536, %v535
  %v557 = vpack.c.bf16 %v538, %v537
  %v558 = vpack.c.bf16 %v540, %v539
  %v559 = vpack.c.bf16 %v542, %v541
  %v560 = vpack.c.bf16 %v544, %v543
  %v561 = vpack.c.bf16 %v546, %v545
  %v562 = vpack.c.bf16 %v548, %v547
  %v563 = vpack.c.bf16 %v550, %v549
  %v564 = vld [vmem:[%s6] sm:$0xf]
  %v565 = vld [vmem:[%s6 + $0x4] sm:$0xf]
  %v566 = vld [vmem:[%s6 + $0x8] sm:$0xf]
  %v567 = vld [vmem:[%s6 + $0xc] sm:$0xf]
  %v568 = vld [vmem:[%s6 + $0x10] sm:$0xf]
  %v569 = vld [vmem:[%s6 + $0x14] sm:$0xf]
  %v570 = vld [vmem:[%s6 + $0x18] sm:$0xf]
  %v571 = vld [vmem:[%s6 + $0x1c] sm:$0xf]
  %v572 = vld [vmem:[%s7] sm:$0x1]
  %v574 = vlaneseq
  %v575 = vshrl.u32 %v574, 7
  %v576 = vsub.s32 0, %v575
  %v577 = vrot.slane %v572, %v576
  %v587 = vunpack.c.l.b16 %v564
  %v588 = vunpack.c.l.b16 %v565
  %v589 = vunpack.c.l.b16 %v566
  %v590 = vunpack.c.l.b16 %v567
  %v591 = vunpack.c.l.b16 %v568
  %v592 = vunpack.c.l.b16 %v569
  %v593 = vunpack.c.l.b16 %v570
  %v594 = vunpack.c.l.b16 %v571
  %v595 = vpack.c.b16 %v588, %v587
  %v596 = vpack.c.b16 %v590, %v589
  %v597 = vpack.c.b16 %v592, %v591
  %v598 = vpack.c.b16 %v594, %v593
  %v604 = vsel %vm348, %v551, 0
  %v607 = vsel %vm348, %v552, 0
  %v610 = vsel %vm348, %v553, 0
  %v613 = vsel %vm348, %v554, 0
  %v616 = vsel %vm348, %v555, 0
  %v619 = vsel %vm348, %v556, 0
  %v622 = vsel %vm348, %v557, 0
  %v625 = vsel %vm348, %v558, 0
  %v628 = vsel %vm348, %v559, 0
  %v631 = vsel %vm348, %v560, 0
  %v634 = vsel %vm348, %v561, 0
  %v637 = vsel %vm348, %v562, 0
  %v640 = vsel %vm348, %v563, 0
  %642 = vmatprep.subr.bf16.mxu0 0
  %643 = vmatpush1.bf16.msra.mxu0 0
  %644 = vmatprep.subr.bf16.mxu0 0
  %645 = vmatpush1.bf16.msra.mxu0 0
  %646 = vmatprep.subr.bf16.mxu0 0
  %647 = vmatpush1.bf16.msra.mxu0 0
  %648 = vmatprep.subr.bf16.mxu0 0
  %649 = vmatpush1.bf16.msra.mxu0 0
  %650 = vmatprep.subr.bf16.mxu0 0
  %651 = vmatpush1.bf16.msra.mxu0 %v598
  %652 = vmatprep.subr.bf16.mxu0 0
  %653 = vmatpush1.bf16.msra.mxu0 %v597
  %654 = vmatprep.subr.bf16.mxu0 0
  %655 = vmatpush1.bf16.msra.mxu0 %v596
  %656 = vmatprep.subr.bf16.mxu0 0
  %657 = vmatpush1.bf16.msra.mxu0 %v595
  %658 = vmatprep.subr.bf16.mxu0 0
  %659 = vmatpush2.bf16.msra.mxu0 0
  %660 = vmatprep.subr.bf16.mxu0 0
  %661 = vmatpush2.bf16.msra.mxu0 0
  %662 = vmatprep.subr.bf16.mxu0 0
  %663 = vmatpush2.bf16.msra.mxu0 0
  %664 = vmatprep.subr.bf16.mxu0 0
  %665 = vmatpush2.bf16.msra.mxu0 0
  %666 = vmatprep.subr.bf16.mxu0 0
  %667 = vmatpush2.bf16.msra.mxu0 0
  %668 = vmatprep.subr.bf16.mxu0 0
  %669 = vmatpush2.bf16.msra.mxu0 0
  %670 = vmatprep.subr.bf16.mxu0 0
  %671 = vmatpush2.bf16.msra.mxu0 0
  %672 = vmatprep.subr.bf16.mxu0 0
  %673 = vmatpush2.bf16.msra.mxu0 0
  %674 = vmatprep.mubr.bf16.mxu0 0
  %675 = vmatmul.mubr.bf16.gmra.mxu0 %v604
  %v676 = vpop.f32.mrf.mxu0
  %v677 = vadd.f32 %v577, %v676
  %v678 = vpop.f32.mrf.mxu0
  %v679 = vpop.f32.mrf.mxu0
  %v680 = vadd.f32 %v577, %v679
  %v681 = vpop.f32.mrf.mxu0
  %682 = vmatprep.mubr.bf16.mxu0 0
  %683 = vmatmul.mubr.bf16.gmra.mxu0 %v607
  %v684 = vpop.f32.mrf.mxu0
  %v685 = vadd.f32 %v577, %v684
  %v686 = vpop.f32.mrf.mxu0
  %v687 = vpop.f32.mrf.mxu0
  %v688 = vadd.f32 %v577, %v687
  %v689 = vpop.f32.mrf.mxu0
  %690 = vmatprep.mubr.bf16.mxu0 0
  %691 = vmatmul.mubr.bf16.gmra.mxu0 %v610
  %v692 = vpop.f32.mrf.mxu0
  %v693 = vadd.f32 %v577, %v692
  %v694 = vpop.f32.mrf.mxu0
  %v695 = vpop.f32.mrf.mxu0
  %v696 = vadd.f32 %v577, %v695
  %v697 = vpop.f32.mrf.mxu0
  %698 = vmatprep.mubr.bf16.mxu0 0
  %699 = vmatmul.mubr.bf16.gmra.mxu0 %v613
  %v700 = vpop.f32.mrf.mxu0
  %v701 = vadd.f32 %v577, %v700
  %v702 = vpop.f32.mrf.mxu0
  %v703 = vpop.f32.mrf.mxu0
  %v704 = vadd.f32 %v577, %v703
  %v705 = vpop.f32.mrf.mxu0
  %706 = vmatprep.mubr.bf16.mxu0 0
  %707 = vmatmul.mubr.bf16.gmra.mxu0 %v616
  %v708 = vpop.f32.mrf.mxu0
  %v709 = vadd.f32 %v577, %v708
  %v710 = vpop.f32.mrf.mxu0
  %v711 = vpop.f32.mrf.mxu0
  %v712 = vadd.f32 %v577, %v711
  %v713 = vpop.f32.mrf.mxu0
  %714 = vmatprep.mubr.bf16.mxu0 0
  %715 = vmatmul.mubr.bf16.gmra.mxu0 %v619
  %v716 = vpop.f32.mrf.mxu0
  %v717 = vadd.f32 %v577, %v716
  %v718 = vpop.f32.mrf.mxu0
  %v719 = vpop.f32.mrf.mxu0
  %v720 = vadd.f32 %v577, %v719
  %v721 = vpop.f32.mrf.mxu0
  %722 = vmatprep.mubr.bf16.mxu0 0
  %723 = vmatmul.mubr.bf16.gmra.mxu0 %v622
  %v724 = vpop.f32.mrf.mxu0
  %v725 = vadd.f32 %v577, %v724
  %v726 = vpop.f32.mrf.mxu0
  %v727 = vpop.f32.mrf.mxu0
  %v728 = vadd.f32 %v577, %v727
  %v729 = vpop.f32.mrf.mxu0
  %730 = vmatprep.mubr.bf16.mxu0 0
  %731 = vmatmul.mubr.bf16.gmra.mxu0 %v625
  %v732 = vpop.f32.mrf.mxu0
  %v733 = vadd.f32 %v577, %v732
  %v734 = vpop.f32.mrf.mxu0
  %v735 = vpop.f32.mrf.mxu0
  %v736 = vadd.f32 %v577, %v735
  %v737 = vpop.f32.mrf.mxu0
  %738 = vmatprep.mubr.bf16.mxu0 0
  %739 = vmatmul.mubr.bf16.gmra.mxu0 %v628
  %v740 = vpop.f32.mrf.mxu0
  %v741 = vadd.f32 %v577, %v740
  %v742 = vpop.f32.mrf.mxu0
  %v743 = vpop.f32.mrf.mxu0
  %v744 = vadd.f32 %v577, %v743
  %v745 = vpop.f32.mrf.mxu0
  %746 = vmatprep.mubr.bf16.mxu0 0
  %747 = vmatmul.mubr.bf16.gmra.mxu0 %v631
  %v748 = vpop.f32.mrf.mxu0
  %v749 = vadd.f32 %v577, %v748
  %v750 = vpop.f32.mrf.mxu0
  %v751 = vpop.f32.mrf.mxu0
  %v752 = vadd.f32 %v577, %v751
  %v753 = vpop.f32.mrf.mxu0
  %754 = vmatprep.mubr.bf16.mxu0 0
  %755 = vmatmul.mubr.bf16.gmra.mxu0 %v634
  %v756 = vpop.f32.mrf.mxu0
  %v757 = vadd.f32 %v577, %v756
  %v758 = vpop.f32.mrf.mxu0
  %v759 = vpop.f32.mrf.mxu0
  %v760 = vadd.f32 %v577, %v759
  %v761 = vpop.f32.mrf.mxu0
  %762 = vmatprep.mubr.bf16.mxu0 0
  %763 = vmatmul.mubr.bf16.gmra.mxu0 %v637
  %v764 = vpop.f32.mrf.mxu0
  %v765 = vadd.f32 %v577, %v764
  %v766 = vpop.f32.mrf.mxu0
  %v767 = vpop.f32.mrf.mxu0
  %v768 = vadd.f32 %v577, %v767
  %v769 = vpop.f32.mrf.mxu0
  %770 = vmatprep.mubr.bf16.mxu0 0
  %771 = vmatmul.mubr.bf16.gmra.mxu0 %v640
  %v772 = vpop.f32.mrf.mxu0
  %v773 = vadd.f32 %v577, %v772
  %v774 = vpop.f32.mrf.mxu0
  %v775 = vpop.f32.mrf.mxu0
  %v776 = vadd.f32 %v577, %v775
  %v777 = vpop.f32.mrf.mxu0
  %778 = vdwg.mxu0
  %v779 = vtanh.pop %v677
  %v780 = vtanh.pop %v680
  %v781 = vtanh.pop %v685
  %v782 = vtanh.pop %v688
  %v783 = vtanh.pop %v693
  %v784 = vtanh.pop %v696
  %v785 = vtanh.pop %v701
  %v786 = vtanh.pop %v704
  %v787 = vtanh.pop %v709
  %v788 = vtanh.pop %v712
  %v789 = vtanh.pop %v717
  %v790 = vtanh.pop %v720
  %v791 = vtanh.pop %v725
  %v792 = vtanh.pop %v728
  %v793 = vtanh.pop %v733
  %v794 = vtanh.pop %v736
  %v795 = vtanh.pop %v741
  %v796 = vtanh.pop %v744
  %v797 = vtanh.pop %v749
  %v798 = vtanh.pop %v752
  %v799 = vtanh.pop %v757
  %v800 = vtanh.pop %v760
  %v801 = vtanh.pop %v765
  %v802 = vtanh.pop %v768
  %v803 = vtanh.pop %v773
  %v804 = vtanh.pop %v776
  %v805 = vpack.c.bf16 %v780, %v779
  %v806 = vpack.c.bf16 %v782, %v781
  %v807 = vpack.c.bf16 %v784, %v783
  %v808 = vpack.c.bf16 %v786, %v785
  %v809 = vpack.c.bf16 %v788, %v787
  %v810 = vpack.c.bf16 %v790, %v789
  %v811 = vpack.c.bf16 %v792, %v791
  %v812 = vpack.c.bf16 %v794, %v793
  %v813 = vpack.c.bf16 %v796, %v795
  %v814 = vpack.c.bf16 %v798, %v797
  %v815 = vpack.c.bf16 %v800, %v799
  %v816 = vpack.c.bf16 %v802, %v801
  %v817 = vpack.c.bf16 %v804, %v803
  %v818 = vld [vmem:[%s8] sm:$0xf]
  %v819 = vld [vmem:[%s8 + $0x4] sm:$0xf]
  %v820 = vld [vmem:[%s8 + $0x8] sm:$0xf]
  %v821 = vld [vmem:[%s8 + $0xc] sm:$0xf]
  %v822 = vld [vmem:[%s8 + $0x10] sm:$0xf]
  %v823 = vld [vmem:[%s8 + $0x14] sm:$0xf]
  %v824 = vld [vmem:[%s8 + $0x18] sm:$0xf]
  %v825 = vld [vmem:[%s8 + $0x1c] sm:$0xf]
  %v826 = vld [vmem:[%s9] sm:$0x1]
  %v828 = vlaneseq
  %v829 = vshrl.u32 %v828, 7
  %v830 = vsub.s32 0, %v829
  %v831 = vrot.slane %v826, %v830
  %v841 = vunpack.c.l.b16 %v818
  %v842 = vunpack.c.l.b16 %v819
  %v843 = vunpack.c.l.b16 %v820
  %v844 = vunpack.c.l.b16 %v821
  %v845 = vunpack.c.l.b16 %v822
  %v846 = vunpack.c.l.b16 %v823
  %v847 = vunpack.c.l.b16 %v824
  %v848 = vunpack.c.l.b16 %v825
  %v849 = vpack.c.b16 %v842, %v841
  %v850 = vpack.c.b16 %v844, %v843
  %v851 = vpack.c.b16 %v846, %v845
  %v852 = vpack.c.b16 %v848, %v847
  %v858 = vsel %vm348, %v805, 0
  %v861 = vsel %vm348, %v806, 0
  %v864 = vsel %vm348, %v807, 0
  %v867 = vsel %vm348, %v808, 0
  %v870 = vsel %vm348, %v809, 0
  %v873 = vsel %vm348, %v810, 0
  %v876 = vsel %vm348, %v811, 0
  %v879 = vsel %vm348, %v812, 0
  %v882 = vsel %vm348, %v813, 0
  %v885 = vsel %vm348, %v814, 0
  %v888 = vsel %vm348, %v815, 0
  %v891 = vsel %vm348, %v816, 0
  %v894 = vsel %vm348, %v817, 0
  %896 = vmatprep.subr.bf16.mxu0 0
  %897 = vmatpush1.bf16.msra.mxu0 0
  %898 = vmatprep.subr.bf16.mxu0 0
  %899 = vmatpush1.bf16.msra.mxu0 0
  %900 = vmatprep.subr.bf16.mxu0 0
  %901 = vmatpush1.bf16.msra.mxu0 0
  %902 = vmatprep.subr.bf16.mxu0 0
  %903 = vmatpush1.bf16.msra.mxu0 0
  %904 = vmatprep.subr.bf16.mxu0 0
  %905 = vmatpush1.bf16.msra.mxu0 %v852
  %906 = vmatprep.subr.bf16.mxu0 0
  %907 = vmatpush1.bf16.msra.mxu0 %v851
  %908 = vmatprep.subr.bf16.mxu0 0
  %909 = vmatpush1.bf16.msra.mxu0 %v850
  %910 = vmatprep.subr.bf16.mxu0 0
  %911 = vmatpush1.bf16.msra.mxu0 %v849
  %912 = vmatprep.subr.bf16.mxu0 0
  %913 = vmatpush2.bf16.msra.mxu0 0
  %914 = vmatprep.subr.bf16.mxu0 0
  %915 = vmatpush2.bf16.msra.mxu0 0
  %916 = vmatprep.subr.bf16.mxu0 0
  %917 = vmatpush2.bf16.msra.mxu0 0
  %918 = vmatprep.subr.bf16.mxu0 0
  %919 = vmatpush2.bf16.msra.mxu0 0
  %920 = vmatprep.subr.bf16.mxu0 0
  %921 = vmatpush2.bf16.msra.mxu0 0
  %922 = vmatprep.subr.bf16.mxu0 0
  %923 = vmatpush2.bf16.msra.mxu0 0
  %924 = vmatprep.subr.bf16.mxu0 0
  %925 = vmatpush2.bf16.msra.mxu0 0
  %926 = vmatprep.subr.bf16.mxu0 0
  %927 = vmatpush2.bf16.msra.mxu0 0
  %928 = vmatprep.mubr.bf16.mxu0 0
  %929 = vmatmul.mubr.bf16.gmra.mxu0 %v858
  %v930 = vpop.f32.mrf.mxu0
  %v931 = vadd.f32 %v831, %v930
  %v932 = vpop.f32.mrf.mxu0
  %v933 = vpop.f32.mrf.mxu0
  %v934 = vadd.f32 %v831, %v933
  %v935 = vpop.f32.mrf.mxu0
  %936 = vmatprep.mubr.bf16.mxu0 0
  %937 = vmatmul.mubr.bf16.gmra.mxu0 %v861
  %v938 = vpop.f32.mrf.mxu0
  %v939 = vadd.f32 %v831, %v938
  %v940 = vpop.f32.mrf.mxu0
  %v941 = vpop.f32.mrf.mxu0
  %v942 = vadd.f32 %v831, %v941
  %v943 = vpop.f32.mrf.mxu0
  %944 = vmatprep.mubr.bf16.mxu0 0
  %945 = vmatmul.mubr.bf16.gmra.mxu0 %v864
  %v946 = vpop.f32.mrf.mxu0
  %v947 = vadd.f32 %v831, %v946
  %v948 = vpop.f32.mrf.mxu0
  %v949 = vpop.f32.mrf.mxu0
  %v950 = vadd.f32 %v831, %v949
  %v951 = vpop.f32.mrf.mxu0
  %952 = vmatprep.mubr.bf16.mxu0 0
  %953 = vmatmul.mubr.bf16.gmra.mxu0 %v867
  %v954 = vpop.f32.mrf.mxu0
  %v955 = vadd.f32 %v831, %v954
  %v956 = vpop.f32.mrf.mxu0
  %v957 = vpop.f32.mrf.mxu0
  %v958 = vadd.f32 %v831, %v957
  %v959 = vpop.f32.mrf.mxu0
  %960 = vmatprep.mubr.bf16.mxu0 0
  %961 = vmatmul.mubr.bf16.gmra.mxu0 %v870
  %v962 = vpop.f32.mrf.mxu0
  %v963 = vadd.f32 %v831, %v962
  %v964 = vpop.f32.mrf.mxu0
  %v965 = vpop.f32.mrf.mxu0
  %v966 = vadd.f32 %v831, %v965
  %v967 = vpop.f32.mrf.mxu0
  %968 = vmatprep.mubr.bf16.mxu0 0
  %969 = vmatmul.mubr.bf16.gmra.mxu0 %v873
  %v970 = vpop.f32.mrf.mxu0
  %v971 = vadd.f32 %v831, %v970
  %v972 = vpop.f32.mrf.mxu0
  %v973 = vpop.f32.mrf.mxu0
  %v974 = vadd.f32 %v831, %v973
  %v975 = vpop.f32.mrf.mxu0
  %976 = vmatprep.mubr.bf16.mxu0 0
  %977 = vmatmul.mubr.bf16.gmra.mxu0 %v876
  %v978 = vpop.f32.mrf.mxu0
  %v979 = vadd.f32 %v831, %v978
  %v980 = vpop.f32.mrf.mxu0
  %v981 = vpop.f32.mrf.mxu0
  %v982 = vadd.f32 %v831, %v981
  %v983 = vpop.f32.mrf.mxu0
  %984 = vmatprep.mubr.bf16.mxu0 0
  %985 = vmatmul.mubr.bf16.gmra.mxu0 %v879
  %v986 = vpop.f32.mrf.mxu0
  %v987 = vadd.f32 %v831, %v986
  %v988 = vpop.f32.mrf.mxu0
  %v989 = vpop.f32.mrf.mxu0
  %v990 = vadd.f32 %v831, %v989
  %v991 = vpop.f32.mrf.mxu0
  %992 = vmatprep.mubr.bf16.mxu0 0
  %993 = vmatmul.mubr.bf16.gmra.mxu0 %v882
  %v994 = vpop.f32.mrf.mxu0
  %v995 = vadd.f32 %v831, %v994
  %v996 = vpop.f32.mrf.mxu0
  %v997 = vpop.f32.mrf.mxu0
  %v998 = vadd.f32 %v831, %v997
  %v999 = vpop.f32.mrf.mxu0
  %1000 = vmatprep.mubr.bf16.mxu0 0
  %1001 = vmatmul.mubr.bf16.gmra.mxu0 %v885
  %v1002 = vpop.f32.mrf.mxu0
  %v1003 = vadd.f32 %v831, %v1002
  %v1004 = vpop.f32.mrf.mxu0
  %v1005 = vpop.f32.mrf.mxu0
  %v1006 = vadd.f32 %v831, %v1005
  %v1007 = vpop.f32.mrf.mxu0
  %1008 = vmatprep.mubr.bf16.mxu0 0
  %1009 = vmatmul.mubr.bf16.gmra.mxu0 %v888
  %v1010 = vpop.f32.mrf.mxu0
  %v1011 = vadd.f32 %v831, %v1010
  %v1012 = vpop.f32.mrf.mxu0
  %v1013 = vpop.f32.mrf.mxu0
  %v1014 = vadd.f32 %v831, %v1013
  %v1015 = vpop.f32.mrf.mxu0
  %1016 = vmatprep.mubr.bf16.mxu0 0
  %1017 = vmatmul.mubr.bf16.gmra.mxu0 %v891
  %v1018 = vpop.f32.mrf.mxu0
  %v1019 = vadd.f32 %v831, %v1018
  %v1020 = vpop.f32.mrf.mxu0
  %v1021 = vpop.f32.mrf.mxu0
  %v1022 = vadd.f32 %v831, %v1021
  %v1023 = vpop.f32.mrf.mxu0
  %1024 = vmatprep.mubr.bf16.mxu0 0
  %1025 = vmatmul.mubr.bf16.gmra.mxu0 %v894
  %v1026 = vpop.f32.mrf.mxu0
  %v1027 = vadd.f32 %v831, %v1026
  %v1028 = vpop.f32.mrf.mxu0
  %v1029 = vpop.f32.mrf.mxu0
  %v1030 = vadd.f32 %v831, %v1029
  %v1031 = vpop.f32.mrf.mxu0
  %1032 = vdwg.mxu0
  %v1033 = vtanh.pop %v931
  %v1034 = vtanh.pop %v934
  %v1035 = vtanh.pop %v939
  %v1036 = vtanh.pop %v942
  %v1037 = vtanh.pop %v947
  %v1038 = vtanh.pop %v950
  %v1039 = vtanh.pop %v955
  %v1040 = vtanh.pop %v958
  %v1041 = vtanh.pop %v963
  %v1042 = vtanh.pop %v966
  %v1043 = vtanh.pop %v971
  %v1044 = vtanh.pop %v974
  %v1045 = vtanh.pop %v979
  %v1046 = vtanh.pop %v982
  %v1047 = vtanh.pop %v987
  %v1048 = vtanh.pop %v990
  %v1049 = vtanh.pop %v995
  %v1050 = vtanh.pop %v998
  %v1051 = vtanh.pop %v1003
  %v1052 = vtanh.pop %v1006
  %v1053 = vtanh.pop %v1011
  %v1054 = vtanh.pop %v1014
  %v1055 = vtanh.pop %v1019
  %v1056 = vtanh.pop %v1022
  %v1057 = vtanh.pop %v1027
  %v1058 = vtanh.pop %v1030
  %v1059 = vpack.c.bf16 %v1034, %v1033
  %v1060 = vpack.c.bf16 %v1036, %v1035
  %v1061 = vpack.c.bf16 %v1038, %v1037
  %v1062 = vpack.c.bf16 %v1040, %v1039
  %v1063 = vpack.c.bf16 %v1042, %v1041
  %v1064 = vpack.c.bf16 %v1044, %v1043
  %v1065 = vpack.c.bf16 %v1046, %v1045
  %v1066 = vpack.c.bf16 %v1048, %v1047
  %v1067 = vpack.c.bf16 %v1050, %v1049
  %v1068 = vpack.c.bf16 %v1052, %v1051
  %v1069 = vpack.c.bf16 %v1054, %v1053
  %v1070 = vpack.c.bf16 %v1056, %v1055
  %v1071 = vpack.c.bf16 %v1058, %v1057
  %v1072 = vld [vmem:[%s10] sm:$0xf]
  %v1073 = vld [vmem:[%s10 + $0x4] sm:$0xf]
  %v1074 = vld [vmem:[%s10 + $0x8] sm:$0xf]
  %v1075 = vld [vmem:[%s10 + $0xc] sm:$0xf]
  %v1076 = vld [vmem:[%s10 + $0x10] sm:$0xf]
  %v1077 = vld [vmem:[%s10 + $0x14] sm:$0xf]
  %v1078 = vld [vmem:[%s10 + $0x18] sm:$0xf]
  %v1079 = vld [vmem:[%s10 + $0x1c] sm:$0xf]
  %v1080 = vld [vmem:[%s11] sm:$0x1]
  %v1082 = vlaneseq
  %v1083 = vshrl.u32 %v1082, 7
  %v1084 = vsub.s32 0, %v1083
  %v1085 = vrot.slane %v1080, %v1084
  %v1095 = vunpack.c.l.b16 %v1072
  %v1096 = vunpack.c.l.b16 %v1073
  %v1097 = vunpack.c.l.b16 %v1074
  %v1098 = vunpack.c.l.b16 %v1075
  %v1099 = vunpack.c.l.b16 %v1076
  %v1100 = vunpack.c.l.b16 %v1077
  %v1101 = vunpack.c.l.b16 %v1078
  %v1102 = vunpack.c.l.b16 %v1079
  %v1103 = vpack.c.b16 %v1096, %v1095
  %v1104 = vpack.c.b16 %v1098, %v1097
  %v1105 = vpack.c.b16 %v1100, %v1099
  %v1106 = vpack.c.b16 %v1102, %v1101
  %v1112 = vsel %vm348, %v1059, 0
  %v1115 = vsel %vm348, %v1060, 0
  %v1118 = vsel %vm348, %v1061, 0
  %v1121 = vsel %vm348, %v1062, 0
  %v1124 = vsel %vm348, %v1063, 0
  %v1127 = vsel %vm348, %v1064, 0
  %v1130 = vsel %vm348, %v1065, 0
  %v1133 = vsel %vm348, %v1066, 0
  %v1136 = vsel %vm348, %v1067, 0
  %v1139 = vsel %vm348, %v1068, 0
  %v1142 = vsel %vm348, %v1069, 0
  %v1145 = vsel %vm348, %v1070, 0
  %v1148 = vsel %vm348, %v1071, 0
  %1150 = vmatprep.subr.bf16.mxu0 0
  %1151 = vmatpush1.bf16.msra.mxu0 0
  %1152 = vmatprep.subr.bf16.mxu0 0
  %1153 = vmatpush1.bf16.msra.mxu0 0
  %1154 = vmatprep.subr.bf16.mxu0 0
  %1155 = vmatpush1.bf16.msra.mxu0 0
  %1156 = vmatprep.subr.bf16.mxu0 0
  %1157 = vmatpush1.bf16.msra.mxu0 0
  %1158 = vmatprep.subr.bf16.mxu0 0
  %1159 = vmatpush1.bf16.msra.mxu0 %v1106
  %1160 = vmatprep.subr.bf16.mxu0 0
  %1161 = vmatpush1.bf16.msra.mxu0 %v1105
  %1162 = vmatprep.subr.bf16.mxu0 0
  %1163 = vmatpush1.bf16.msra.mxu0 %v1104
  %1164 = vmatprep.subr.bf16.mxu0 0
  %1165 = vmatpush1.bf16.msra.mxu0 %v1103
  %1166 = vmatprep.subr.bf16.mxu0 0
  %1167 = vmatpush2.bf16.msra.mxu0 0
  %1168 = vmatprep.subr.bf16.mxu0 0
  %1169 = vmatpush2.bf16.msra.mxu0 0
  %1170 = vmatprep.subr.bf16.mxu0 0
  %1171 = vmatpush2.bf16.msra.mxu0 0
  %1172 = vmatprep.subr.bf16.mxu0 0
  %1173 = vmatpush2.bf16.msra.mxu0 0
  %1174 = vmatprep.subr.bf16.mxu0 0
  %1175 = vmatpush2.bf16.msra.mxu0 0
  %1176 = vmatprep.subr.bf16.mxu0 0
  %1177 = vmatpush2.bf16.msra.mxu0 0
  %1178 = vmatprep.subr.bf16.mxu0 0
  %1179 = vmatpush2.bf16.msra.mxu0 0
  %1180 = vmatprep.subr.bf16.mxu0 0
  %1181 = vmatpush2.bf16.msra.mxu0 0
  %1182 = vmatprep.mubr.bf16.mxu0 0
  %1183 = vmatmul.mubr.bf16.gmra.mxu0 %v1112
  %v1184 = vpop.f32.mrf.mxu0
  %v1185 = vadd.f32 %v1085, %v1184
  %v1186 = vpop.f32.mrf.mxu0
  %v1187 = vpop.f32.mrf.mxu0
  %v1188 = vadd.f32 %v1085, %v1187
  %v1189 = vpop.f32.mrf.mxu0
  %1190 = vmatprep.mubr.bf16.mxu0 0
  %1191 = vmatmul.mubr.bf16.gmra.mxu0 %v1115
  %v1192 = vpop.f32.mrf.mxu0
  %v1193 = vadd.f32 %v1085, %v1192
  %v1194 = vpop.f32.mrf.mxu0
  %v1195 = vpop.f32.mrf.mxu0
  %v1196 = vadd.f32 %v1085, %v1195
  %v1197 = vpop.f32.mrf.mxu0
  %1198 = vmatprep.mubr.bf16.mxu0 0
  %1199 = vmatmul.mubr.bf16.gmra.mxu0 %v1118
  %v1200 = vpop.f32.mrf.mxu0
  %v1201 = vadd.f32 %v1085, %v1200
  %v1202 = vpop.f32.mrf.mxu0
  %v1203 = vpop.f32.mrf.mxu0
  %v1204 = vadd.f32 %v1085, %v1203
  %v1205 = vpop.f32.mrf.mxu0
  %1206 = vmatprep.mubr.bf16.mxu0 0
  %1207 = vmatmul.mubr.bf16.gmra.mxu0 %v1121
  %v1208 = vpop.f32.mrf.mxu0
  %v1209 = vadd.f32 %v1085, %v1208
  %v1210 = vpop.f32.mrf.mxu0
  %v1211 = vpop.f32.mrf.mxu0
  %v1212 = vadd.f32 %v1085, %v1211
  %v1213 = vpop.f32.mrf.mxu0
  %1214 = vmatprep.mubr.bf16.mxu0 0
  %1215 = vmatmul.mubr.bf16.gmra.mxu0 %v1124
  %v1216 = vpop.f32.mrf.mxu0
  %v1217 = vadd.f32 %v1085, %v1216
  %v1218 = vpop.f32.mrf.mxu0
  %v1219 = vpop.f32.mrf.mxu0
  %v1220 = vadd.f32 %v1085, %v1219
  %v1221 = vpop.f32.mrf.mxu0
  %1222 = vmatprep.mubr.bf16.mxu0 0
  %1223 = vmatmul.mubr.bf16.gmra.mxu0 %v1127
  %v1224 = vpop.f32.mrf.mxu0
  %v1225 = vadd.f32 %v1085, %v1224
  %v1226 = vpop.f32.mrf.mxu0
  %v1227 = vpop.f32.mrf.mxu0
  %v1228 = vadd.f32 %v1085, %v1227
  %v1229 = vpop.f32.mrf.mxu0
  %1230 = vmatprep.mubr.bf16.mxu0 0
  %1231 = vmatmul.mubr.bf16.gmra.mxu0 %v1130
  %v1232 = vpop.f32.mrf.mxu0
  %v1233 = vadd.f32 %v1085, %v1232
  %v1234 = vpop.f32.mrf.mxu0
  %v1235 = vpop.f32.mrf.mxu0
  %v1236 = vadd.f32 %v1085, %v1235
  %v1237 = vpop.f32.mrf.mxu0
  %1238 = vmatprep.mubr.bf16.mxu0 0
  %1239 = vmatmul.mubr.bf16.gmra.mxu0 %v1133
  %v1240 = vpop.f32.mrf.mxu0
  %v1241 = vadd.f32 %v1085, %v1240
  %v1242 = vpop.f32.mrf.mxu0
  %v1243 = vpop.f32.mrf.mxu0
  %v1244 = vadd.f32 %v1085, %v1243
  %v1245 = vpop.f32.mrf.mxu0
  %1246 = vmatprep.mubr.bf16.mxu0 0
  %1247 = vmatmul.mubr.bf16.gmra.mxu0 %v1136
  %v1248 = vpop.f32.mrf.mxu0
  %v1249 = vadd.f32 %v1085, %v1248
  %v1250 = vpop.f32.mrf.mxu0
  %v1251 = vpop.f32.mrf.mxu0
  %v1252 = vadd.f32 %v1085, %v1251
  %v1253 = vpop.f32.mrf.mxu0
  %1254 = vmatprep.mubr.bf16.mxu0 0
  %1255 = vmatmul.mubr.bf16.gmra.mxu0 %v1139
  %v1256 = vpop.f32.mrf.mxu0
  %v1257 = vadd.f32 %v1085, %v1256
  %v1258 = vpop.f32.mrf.mxu0
  %v1259 = vpop.f32.mrf.mxu0
  %v1260 = vadd.f32 %v1085, %v1259
  %v1261 = vpop.f32.mrf.mxu0
  %1262 = vmatprep.mubr.bf16.mxu0 0
  %1263 = vmatmul.mubr.bf16.gmra.mxu0 %v1142
  %v1264 = vpop.f32.mrf.mxu0
  %v1265 = vadd.f32 %v1085, %v1264
  %v1266 = vpop.f32.mrf.mxu0
  %v1267 = vpop.f32.mrf.mxu0
  %v1268 = vadd.f32 %v1085, %v1267
  %v1269 = vpop.f32.mrf.mxu0
  %1270 = vmatprep.mubr.bf16.mxu0 0
  %1271 = vmatmul.mubr.bf16.gmra.mxu0 %v1145
  %v1272 = vpop.f32.mrf.mxu0
  %v1273 = vadd.f32 %v1085, %v1272
  %v1274 = vpop.f32.mrf.mxu0
  %v1275 = vpop.f32.mrf.mxu0
  %v1276 = vadd.f32 %v1085, %v1275
  %v1277 = vpop.f32.mrf.mxu0
  %1278 = vmatprep.mubr.bf16.mxu0 0
  %1279 = vmatmul.mubr.bf16.gmra.mxu0 %v1148
  %v1280 = vpop.f32.mrf.mxu0
  %v1281 = vadd.f32 %v1085, %v1280
  %v1282 = vpop.f32.mrf.mxu0
  %v1283 = vpop.f32.mrf.mxu0
  %v1284 = vadd.f32 %v1085, %v1283
  %v1285 = vpop.f32.mrf.mxu0
  %1286 = vdwg.mxu0
  %v1287 = vld [vmem:[%s0] sm:$0xff]
  %v1288 = vld [vmem:[%s0 + $0x8] sm:$0xff]
  %v1289 = vld [vmem:[%s0 + $0x10] sm:$0xff]
  %v1290 = vld [vmem:[%s0 + $0x18] sm:$0xff]
  %v1291 = vld [vmem:[%s0 + $0x20] sm:$0xff]
  %v1292 = vld [vmem:[%s0 + $0x28] sm:$0xff]
  %v1293 = vld [vmem:[%s0 + $0x30] sm:$0xff]
  %v1294 = vld [vmem:[%s0 + $0x38] sm:$0xff]
  %v1295 = vld [vmem:[%s0 + $0x40] sm:$0xff]
  %v1296 = vld [vmem:[%s0 + $0x48] sm:$0xff]
  %v1297 = vld [vmem:[%s0 + $0x50] sm:$0xff]
  %v1298 = vld [vmem:[%s0 + $0x58] sm:$0xff]
  %v1299 = vld [vmem:[%s0 + $0x60] sm:$0xff]
  %v1300 = vld [vmem:[%s0 + $0x68] sm:$0xff]
  %v1301 = vld [vmem:[%s0 + $0x70] sm:$0xff]
  %v1302 = vld [vmem:[%s0 + $0x78] sm:$0xff]
  %v1303 = vld [vmem:[%s0 + $0x80] sm:$0xff]
  %v1304 = vld [vmem:[%s0 + $0x88] sm:$0xff]
  %v1305 = vld [vmem:[%s0 + $0x90] sm:$0xff]
  %v1306 = vld [vmem:[%s0 + $0x98] sm:$0xff]
  %v1307 = vld [vmem:[%s0 + $0xa0] sm:$0xff]
  %v1308 = vld [vmem:[%s0 + $0xa8] sm:$0xff]
  %v1309 = vld [vmem:[%s0 + $0xb0] sm:$0xff]
  %v1310 = vld [vmem:[%s0 + $0xb8] sm:$0xff]
  %v1311 = vld [vmem:[%s0 + $0xc0] sm:$0xff]
  %v1312 = vld [vmem:[%s0 + $0xc8] sm:$0xff]
  %v1313 = vmul.f32 %v1287, %v1185
  %v1314 = vmul.f32 %v1288, %v1188
  %v1315 = vmul.f32 %v1289, %v1193
  %v1316 = vmul.f32 %v1290, %v1196
  %v1317 = vmul.f32 %v1291, %v1201
  %v1318 = vmul.f32 %v1292, %v1204
  %v1319 = vmul.f32 %v1293, %v1209
  %v1320 = vmul.f32 %v1294, %v1212
  %v1321 = vmul.f32 %v1295, %v1217
  %v1322 = vmul.f32 %v1296, %v1220
  %v1323 = vmul.f32 %v1297, %v1225
  %v1324 = vmul.f32 %v1298, %v1228
  %v1325 = vmul.f32 %v1299, %v1233
  %v1326 = vmul.f32 %v1300, %v1236
  %v1327 = vmul.f32 %v1301, %v1241
  %v1328 = vmul.f32 %v1302, %v1244
  %v1329 = vmul.f32 %v1303, %v1249
  %v1330 = vmul.f32 %v1304, %v1252
  %v1331 = vmul.f32 %v1305, %v1257
  %v1332 = vmul.f32 %v1306, %v1260
  %v1333 = vmul.f32 %v1307, %v1265
  %v1334 = vmul.f32 %v1308, %v1268
  %v1335 = vmul.f32 %v1309, %v1273
  %v1336 = vmul.f32 %v1310, %v1276
  %v1337 = vmul.f32 %v1311, %v1281
  %v1338 = vmul.f32 %v1312, %v1284
  %vm1339 = vcmask 261120
  %v1340 = vsel %vm1339, %v1313, 0.0
  %1341 = vadd.xlane.f32.xlu0 %v1340
  %v1342 = vpop.xlane.xlu0 %1341
  %v1343 = vsel %vm1339, %v1314, 0.0
  %1344 = vadd.xlane.f32.xlu0 %v1343
  %v1345 = vpop.xlane.xlu0 %1344
  %v1346 = vsel %vm1339, %v1315, 0.0
  %1347 = vadd.xlane.f32.xlu0 %v1346
  %v1348 = vpop.xlane.xlu0 %1347
  %v1349 = vsel %vm1339, %v1316, 0.0
  %1350 = vadd.xlane.f32.xlu0 %v1349
  %v1351 = vpop.xlane.xlu0 %1350
  %v1352 = vsel %vm1339, %v1317, 0.0
  %1353 = vadd.xlane.f32.xlu0 %v1352
  %v1354 = vpop.xlane.xlu0 %1353
  %v1355 = vsel %vm1339, %v1318, 0.0
  %1356 = vadd.xlane.f32.xlu0 %v1355
  %v1357 = vpop.xlane.xlu0 %1356
  %v1358 = vsel %vm1339, %v1319, 0.0
  %1359 = vadd.xlane.f32.xlu0 %v1358
  %v1360 = vpop.xlane.xlu0 %1359
  %v1361 = vsel %vm1339, %v1320, 0.0
  %1362 = vadd.xlane.f32.xlu0 %v1361
  %v1363 = vpop.xlane.xlu0 %1362
  %v1364 = vsel %vm1339, %v1321, 0.0
  %1365 = vadd.xlane.f32.xlu0 %v1364
  %v1366 = vpop.xlane.xlu0 %1365
  %v1367 = vsel %vm1339, %v1322, 0.0
  %1368 = vadd.xlane.f32.xlu0 %v1367
  %v1369 = vpop.xlane.xlu0 %1368
  %v1370 = vsel %vm1339, %v1323, 0.0
  %1371 = vadd.xlane.f32.xlu0 %v1370
  %v1372 = vpop.xlane.xlu0 %1371
  %v1373 = vsel %vm1339, %v1324, 0.0
  %1374 = vadd.xlane.f32.xlu0 %v1373
  %v1375 = vpop.xlane.xlu0 %1374
  %v1376 = vsel %vm1339, %v1325, 0.0
  %1377 = vadd.xlane.f32.xlu0 %v1376
  %v1378 = vpop.xlane.xlu0 %1377
  %v1379 = vsel %vm1339, %v1326, 0.0
  %1380 = vadd.xlane.f32.xlu0 %v1379
  %v1381 = vpop.xlane.xlu0 %1380
  %v1382 = vsel %vm1339, %v1327, 0.0
  %1383 = vadd.xlane.f32.xlu0 %v1382
  %v1384 = vpop.xlane.xlu0 %1383
  %v1385 = vsel %vm1339, %v1328, 0.0
  %1386 = vadd.xlane.f32.xlu0 %v1385
  %v1387 = vpop.xlane.xlu0 %1386
  %v1388 = vsel %vm1339, %v1329, 0.0
  %1389 = vadd.xlane.f32.xlu0 %v1388
  %v1390 = vpop.xlane.xlu0 %1389
  %v1391 = vsel %vm1339, %v1330, 0.0
  %1392 = vadd.xlane.f32.xlu0 %v1391
  %v1393 = vpop.xlane.xlu0 %1392
  %v1394 = vsel %vm1339, %v1331, 0.0
  %1395 = vadd.xlane.f32.xlu0 %v1394
  %v1396 = vpop.xlane.xlu0 %1395
  %v1397 = vsel %vm1339, %v1332, 0.0
  %1398 = vadd.xlane.f32.xlu0 %v1397
  %v1399 = vpop.xlane.xlu0 %1398
  %v1400 = vsel %vm1339, %v1333, 0.0
  %1401 = vadd.xlane.f32.xlu0 %v1400
  %v1402 = vpop.xlane.xlu0 %1401
  %v1403 = vsel %vm1339, %v1334, 0.0
  %1404 = vadd.xlane.f32.xlu0 %v1403
  %v1405 = vpop.xlane.xlu0 %1404
  %v1406 = vsel %vm1339, %v1335, 0.0
  %1407 = vadd.xlane.f32.xlu0 %v1406
  %v1408 = vpop.xlane.xlu0 %1407
  %v1409 = vsel %vm1339, %v1336, 0.0
  %1410 = vadd.xlane.f32.xlu0 %v1409
  %v1411 = vpop.xlane.xlu0 %1410
  %v1412 = vsel %vm1339, %v1337, 0.0
  %1413 = vadd.xlane.f32.xlu0 %v1412
  %v1414 = vpop.xlane.xlu0 %1413
  %v1415 = vsel %vm1339, %v1338, 0.0
  %1416 = vadd.xlane.f32.xlu0 %v1415
  %v1417 = vpop.xlane.xlu0 %1416
  %vm1418 = vcmask 7168
  %1419 = vst.msk [vmem:[%s12] sm:$0xff] %vm1418, %v1342
  %1420 = vst.msk [vmem:[%s12 + $0x8] sm:$0xff] %vm1418, %v1345
  %1421 = vst.msk [vmem:[%s12 + $0x10] sm:$0xff] %vm1418, %v1348
  %1422 = vst.msk [vmem:[%s12 + $0x18] sm:$0xff] %vm1418, %v1351
  %1423 = vst.msk [vmem:[%s12 + $0x20] sm:$0xff] %vm1418, %v1354
  %1424 = vst.msk [vmem:[%s12 + $0x28] sm:$0xff] %vm1418, %v1357
  %1425 = vst.msk [vmem:[%s12 + $0x30] sm:$0xff] %vm1418, %v1360
  %1426 = vst.msk [vmem:[%s12 + $0x38] sm:$0xff] %vm1418, %v1363
  %1427 = vst.msk [vmem:[%s12 + $0x40] sm:$0xff] %vm1418, %v1366
  %1428 = vst.msk [vmem:[%s12 + $0x48] sm:$0xff] %vm1418, %v1369
  %1429 = vst.msk [vmem:[%s12 + $0x50] sm:$0xff] %vm1418, %v1372
  %1430 = vst.msk [vmem:[%s12 + $0x58] sm:$0xff] %vm1418, %v1375
  %1431 = vst.msk [vmem:[%s12 + $0x60] sm:$0xff] %vm1418, %v1378
  %1432 = vst.msk [vmem:[%s12 + $0x68] sm:$0xff] %vm1418, %v1381
  %1433 = vst.msk [vmem:[%s12 + $0x70] sm:$0xff] %vm1418, %v1384
  %1434 = vst.msk [vmem:[%s12 + $0x78] sm:$0xff] %vm1418, %v1387
  %1435 = vst.msk [vmem:[%s12 + $0x80] sm:$0xff] %vm1418, %v1390
  %1436 = vst.msk [vmem:[%s12 + $0x88] sm:$0xff] %vm1418, %v1393
  %1437 = vst.msk [vmem:[%s12 + $0x90] sm:$0xff] %vm1418, %v1396
  %1438 = vst.msk [vmem:[%s12 + $0x98] sm:$0xff] %vm1418, %v1399
  %1439 = vst.msk [vmem:[%s12 + $0xa0] sm:$0xff] %vm1418, %v1402
  %1440 = vst.msk [vmem:[%s12 + $0xa8] sm:$0xff] %vm1418, %v1405
  %1441 = vst.msk [vmem:[%s12 + $0xb0] sm:$0xff] %vm1418, %v1408
  %1442 = vst.msk [vmem:[%s12 + $0xb8] sm:$0xff] %vm1418, %v1411
  %1443 = vst.msk [vmem:[%s12 + $0xc0] sm:$0xff] %vm1418, %v1414
  %1444 = vst.msk [vmem:[%s12 + $0xc8] sm:$0xff] %vm1418, %v1417
  // Predicated region
  $region50: #{tpu_custom_call.1} parent=0 // pred_check
    _
  $region51: #{tpu_custom_call.1} parent=0 // pred_check_branch
    %1446 = sbr.rel (0) target = $region53
  $region52: #{tpu_custom_call.1} parent=0 // pred_region
    _
  $region53: #{tpu_custom_call.1} parent=0 // pred_fallthru
    _
  // Predicated region
  $region54: #{tpu_custom_call.1} parent=0 // pred_check
    _
  $region55: #{tpu_custom_call.1} parent=0 // pred_check_branch
    %1448 = sbr.rel (0) target = $region57
  $region56: #{tpu_custom_call.1} parent=0 // pred_region
    _
  $region57: #{tpu_custom_call.1} parent=0 // pred_fallthru
    _

</llo_original>
